<compile_context>
chip_gen: v5e
topology: v5e:2x2
jax: 0.10.0
libtpu: 0.0.40
codegen_flags: <defaults>
</compile_context>

<pallas_src>
import jax
import jax.numpy as jnp
from jax import lax
from jax.experimental import pallas as pl
from jax.experimental.pallas import tpu as pltpu


# ----------------------------------------------------------------------------
# Fused kernel: conv(3x3, pad=1, bias folded) -> ReLU -> global-avg-pool (matmul)
#               -> Linear -> ReLU -> Dropout(id) -> Linear -> LayerNorm -> L2 norm
# ----------------------------------------------------------------------------
def _make_fused_kernel(inv_hw):
    def kernel(patch_ref, wconv_ref, pmat_ref,
               w1_ref, b1_ref, w2_ref, b2_ref, gamma_ref, beta_ref, out_ref):
        # ---- conv(3x3, pad=1) + bias as ONE collapsed matmul over all rows of
        # ---- the batch tile: bf16 MXU inputs, f32 accumulation.
        conv = jnp.dot(patch_ref[...], wconv_ref[...],
                       preferred_element_type=jnp.float32)          # (M, COUT) f32
        conv = jnp.maximum(conv, 0.0).astype(jnp.bfloat16)          # ReLU, bf16 for MXU

        # ---- global average pool as a block-diagonal matmul: pmat[t, q] is 1.0
        # ---- on image t's valid rows, 0 elsewhere; 1/(H*W) applied in f32.
        feat = jnp.dot(pmat_ref[...], conv,
                       preferred_element_type=jnp.float32) * inv_hw  # (TB, COUT) f32

        # ---- projection head epilogue (fused): Linear -> ReLU -> Dropout(id)
        # ---- -> Linear -> LayerNorm -> L2 normalize. Stats / normalize in f32.
        h = jnp.dot(feat.astype(jnp.bfloat16), w1_ref[...],
                    preferred_element_type=jnp.float32) + b1_ref[...]
        h = jnp.maximum(h, 0.0)
        # TODO(synk): Dropout(0.2) identity (inference mode).
        y = jnp.dot(h.astype(jnp.bfloat16), w2_ref[...],
                    preferred_element_type=jnp.float32) + b2_ref[...]

        # LayerNorm over last dim (PyTorch default eps=1e-5, biased variance).
        mu = jnp.mean(y, axis=-1, keepdims=True)
        var = jnp.mean(jnp.square(y - mu), axis=-1, keepdims=True)
        y = (y - mu) * lax.rsqrt(var + 1e-5)
        y = y * gamma_ref[...] + beta_ref[...]

        # F.normalize(p=2, dim=1): y / max(||y||, 1e-12) == y * rsqrt(max(ssq, 1e-24))
        ssq = jnp.sum(y * y, axis=-1, keepdims=True)
        out_ref[...] = (y * lax.rsqrt(jnp.maximum(ssq, 1e-24))).astype(out_ref.dtype)

    return kernel


# ----------------------------------------------------------------------------
# Wrapper: wrapper-side dense bf16 im2col + single fused pallas_call
# ----------------------------------------------------------------------------
def visual_embedding_forward(x_nchw, params):
    B, C, H, W = x_nchw.shape
    COUT = params["wconv"].shape[0]            # backbone feature width (in_features)
    HID = params["w1"].shape[1]
    EMB = params["w2"].shape[1]

    # Batch tile: >=8 for dense (8,128) output stores, grows with B up to 32 so the
    # grid keeps >=2 steps (v7x dual-TensorCore sharding) and per-step VMEM stays
    # ~13 MB at TB=32 (fits the 32 MiB scoped budget on v5e/v6e/v7x).
    TB = max(8, min(32, 8 * ((B + 15) // 16)))
    B_pad = pl.cdiv(B, TB) * TB

    Q = H * W                                  # conv output rows per image
    Qp = pl.cdiv(Q, 8) * 8                     # sublane aligned
    K9 = 9 * C                                 # true contraction width (3x3 x Cin)
    KB = K9 + 1                                # + ones column (fused conv bias)
    KP = max(64, pl.cdiv(KB, 64) * 64)         # lane-padded contraction (keep at 64)
    M = TB * Qp                                # rows per grid step

    # --- dense bf16 im2col built once in the wrapper (HBM), lane-dense layout.
    # Column order (k*C + c) matches the conv-weight reshape below; each image is
    # zero-padded independently, so there is no cross-image tap bleed.
    xp = jnp.pad(x_nchw.astype(jnp.float32),
                 ((0, B_pad - B), (0, 0), (1, 1), (1, 1)))            # (B_pad,C,H+2,W+2)
    taps = [xp[:, :, ki:ki + H, kj:kj + W] for ki in range(3) for kj in range(3)]
    pat = jnp.transpose(jnp.stack(taps, axis=1), (0, 3, 4, 1, 2))     # (B_pad,H,W,9,C)
    pat = pat.reshape(B_pad, Q, K9)
    pat = jnp.concatenate([pat, jnp.ones((B_pad, Q, 1), jnp.float32)], axis=-1)
    pat = jnp.pad(pat, ((0, 0), (0, Qp - Q), (0, KP - KB)))
    x_flat = pat.reshape(B_pad * Qp, KP).astype(jnp.bfloat16)         # (B_pad*Qp, KP)

    # --- block-diagonal pooling matrix (bf16, exact 1.0 entries): image t owns
    # --- rows [t*Qp, t*Qp+Q); 1/(H*W) is applied in f32 inside the kernel.
    row_w = jnp.pad(jnp.ones((Q,), jnp.float32), (0, Qp - Q))
    pmat = jnp.kron(jnp.eye(TB, dtype=jnp.float32),
                    row_w.reshape(1, Qp)).astype(jnp.bfloat16)        # (TB, M)

    # --- conv weight: row (ki*3+kj)*C + c of wconv2d is PyTorch wconv[o, c, ki, kj];
    # --- bias appended as an extra contraction row (pairs with the ones column).
    wconv2d = jnp.transpose(params["wconv"], (2, 3, 1, 0)).reshape(K9, COUT)
    wfull = jnp.concatenate([wconv2d, params["bconv"].reshape(1, COUT)], axis=0)
    wfull = jnp.pad(wfull, ((0, KP - KB), (0, 0))).astype(jnp.bfloat16)

    kernel = _make_fused_kernel(1.0 / float(H * W))

    out = pl.pallas_call(
        kernel,
        out_shape=jax.ShapeDtypeStruct((B_pad, EMB), jnp.float32),
        grid_spec=pltpu.PrefetchScalarGridSpec(
            num_scalar_prefetch=0,
            grid=(B_pad // TB,),
            in_specs=[
                pl.BlockSpec((M, KP), lambda i: (i, 0)),       # dense bf16 im2col
                pl.BlockSpec((KP, COUT), lambda i: (0, 0)),    # conv weight+bias (bf16)
                pl.BlockSpec((TB, M), lambda i: (0, 0)),       # pooling matrix (bf16)
                pl.BlockSpec((COUT, HID), lambda i: (0, 0)),   # head W1 (bf16)
                pl.BlockSpec((1, HID), lambda i: (0, 0)),      # head b1 (f32)
                pl.BlockSpec((HID, EMB), lambda i: (0, 0)),    # head W2 (bf16)
                pl.BlockSpec((1, EMB), lambda i: (0, 0)),      # head b2 (f32)
                pl.BlockSpec((1, EMB), lambda i: (0, 0)),      # LayerNorm gamma
                pl.BlockSpec((1, EMB), lambda i: (0, 0)),      # LayerNorm beta
            ],
            out_specs=pl.BlockSpec((TB, EMB), lambda i: (i, 0)),
        ),
        compiler_params=pltpu.CompilerParams(
            # Batch tiles are independent: shard across TensorCores (v7x megacore).
            dimension_semantics=("parallel",),
            # Explicit scoped-VMEM budget: above v5e's 16 MiB default, well under
            # every generation's physical VMEM; per-step usage <= ~13 MB at TB=32.
            vmem_limit_bytes=32 * 1024 * 1024,
        ),
    )(x_flat, wfull, pmat,
      params["w1"].astype(jnp.bfloat16), params["b1"],
      params["w2"].astype(jnp.bfloat16), params["b2"],
      params["gamma"], params["beta"])

    return out[:B]


# ----------------------------------------------------------------------------
# Parameter init (stand-in sizes chosen lane-aligned: 128/256/128 vs resnet50's
# 2048/1024/300) and a pure-JAX f32 reference for verification.
# ----------------------------------------------------------------------------
def init_params(key, cin=4, in_features=128, hidden=256, embedding_dim=128):
    k1, k2, k3, k4, k5 = jax.random.split(key, 5)
    wconv = jax.random.normal(k1, (in_features, cin, 3, 3), jnp.float32) * 0.1
    bconv = jax.random.normal(k2, (1, in_features), jnp.float32) * 0.01
    w1 = jax.random.normal(k3, (in_features, hidden), jnp.float32) / in_features ** 0.5
    b1 = jax.random.normal(k4, (1, hidden), jnp.float32) * 0.01
    w2 = jax.random.normal(k5, (hidden, embedding_dim), jnp.float32) / hidden ** 0.5
    b2 = jnp.zeros((1, embedding_dim), jnp.float32)
    gamma = jnp.ones((1, embedding_dim), jnp.float32)     # nn.LayerNorm defaults
    beta = jnp.zeros((1, embedding_dim), jnp.float32)
    return dict(wconv=wconv, bconv=bconv, w1=w1, b1=b1, w2=w2, b2=b2,
                gamma=gamma, beta=beta)


def reference_forward(x_nchw, params):
    B, C, H, W = x_nchw.shape
    w = params["wconv"]
    xh = jnp.transpose(x_nchw, (0, 2, 3, 1)).astype(jnp.float32)
    xp = jnp.pad(xh, ((0, 0), (1, 1), (1, 1), (0, 0)))
    conv = jnp.zeros((B, H, W, w.shape[0]), jnp.float32)
    for ki in range(3):
        for kj in range(3):
            conv = conv + jnp.einsum("bhwc,oc->bhwo",
                                     xp[:, ki:ki + H, kj:kj + W, :], w[:, :, ki, kj])
    conv = jnp.maximum(conv + params["bconv"].reshape(1, 1, 1, -1), 0.0)
    feat = conv.reshape(B, H * W, -1).mean(axis=1)
    h = jnp.maximum(feat @ params["w1"] + params["b1"], 0.0)
    y = h @ params["w2"] + params["b2"]
    mu = y.mean(axis=-1, keepdims=True)
    var = ((y - mu) ** 2).mean(axis=-1, keepdims=True)
    y = (y - mu) / jnp.sqrt(var + 1e-5) * params["gamma"] + params["beta"]
    n = jnp.sqrt((y * y).sum(axis=-1, keepdims=True))
    return y / jnp.maximum(n, 1e-12)


if __name__ == "__main__":
    key = jax.random.PRNGKey(0)
    kx, kp = jax.random.split(key)

    B, C, H, W = 2, 4, 16, 16
    x = jax.random.normal(kx, (B, C, H, W), jnp.float32)      # NCHW, like PyTorch
    params = init_params(kp, cin=C, in_features=128, hidden=256, embedding_dim=128)

    emb = jax.jit(visual_embedding_forward)(x, params)
    emb = jax.block_until_ready(emb)

    assert emb.shape == (B, 128)
    # sanity: output rows are L2-normalized (normalize is done in f32).
    norms = jnp.linalg.norm(emb, axis=1)
    assert bool(jnp.all(jnp.abs(norms - 1.0) < 1e-3)), "rows are not L2-normalized"
    # bf16 matmul inputs vs. f32 reference: generous tolerance, f32 accumulation.
    ref = reference_forward(x, params)
    assert bool(jnp.max(jnp.abs(emb - ref)) < 3e-2), "mismatch vs f32 reference"

    print("KERNEL_OK")
</pallas_src>

<mosaic_0001>
module attributes {stable_mosaic.version = 11 : i64} {
  func.func @kernel(%arg0: i32, %arg1: memref<2048x64xbf16, #tpu.memory_space<vmem>>, %arg2: memref<64x128xbf16, #tpu.memory_space<vmem>>, %arg3: memref<8x2048xbf16, #tpu.memory_space<vmem>>, %arg4: memref<128x256xbf16, #tpu.memory_space<vmem>>, %arg5: memref<1x256xf32, #tpu.memory_space<vmem>>, %arg6: memref<256x128xbf16, #tpu.memory_space<vmem>>, %arg7: memref<1x128xf32, #tpu.memory_space<vmem>>, %arg8: memref<1x128xf32, #tpu.memory_space<vmem>>, %arg9: memref<1x128xf32, #tpu.memory_space<vmem>>, %arg10: memref<8x128xf32, #tpu.memory_space<vmem>>) attributes {dimension_semantics = [#tpu.dimension_semantics<parallel>], iteration_bounds = array<i64: 1>, scalar_prefetch = 0 : i64, scratch_operands = 0 : i64, tpu.core_type = #tpu.core_type<tc>, window_params = [{transform_indices = @transform_0, window_bounds = array<i64: 2048, 64>}, {pipeline_mode = #tpu.pipeline_mode<synchronous>, transform_indices = @transform_1, window_bounds = array<i64: 64, 128>}, {pipeline_mode = #tpu.pipeline_mode<synchronous>, transform_indices = @transform_2, window_bounds = array<i64: 8, 2048>}, {pipeline_mode = #tpu.pipeline_mode<synchronous>, transform_indices = @transform_3, window_bounds = array<i64: 128, 256>}, {pipeline_mode = #tpu.pipeline_mode<synchronous>, transform_indices = @transform_4, window_bounds = array<i64: 1, 256>}, {pipeline_mode = #tpu.pipeline_mode<synchronous>, transform_indices = @transform_5, window_bounds = array<i64: 256, 128>}, {pipeline_mode = #tpu.pipeline_mode<synchronous>, transform_indices = @transform_6, window_bounds = array<i64: 1, 128>}, {pipeline_mode = #tpu.pipeline_mode<synchronous>, transform_indices = @transform_7, window_bounds = array<i64: 1, 128>}, {pipeline_mode = #tpu.pipeline_mode<synchronous>, transform_indices = @transform_8, window_bounds = array<i64: 1, 128>}, {transform_indices = @transform_9, window_bounds = array<i64: 8, 128>}]} {
    %c0 = arith.constant 0 : index
    %c0_0 = arith.constant 0 : index
    %0 = vector.load %arg1[%c0, %c0_0] : memref<2048x64xbf16, #tpu.memory_space<vmem>>, vector<2048x64xbf16>
    %c0_1 = arith.constant 0 : index
    %c0_2 = arith.constant 0 : index
    %1 = vector.load %arg2[%c0_1, %c0_2] : memref<64x128xbf16, #tpu.memory_space<vmem>>, vector<64x128xbf16>
    %cst = arith.constant dense<0.000000e+00> : vector<2048x128xf32>
    %2 = tpu.matmul %0, %1, %cst {dimension_numbers = #tpu.dot_dimension_numbers<[1], [0], [0], [1], [0, 0, 1, 1], [], []>} : vector<2048x64xbf16>, vector<64x128xbf16>, vector<2048x128xf32> -> vector<2048x128xf32>
    %cst_3 = arith.constant 0.000000e+00 : f32
    %3 = vector.broadcast %cst_3 : f32 to vector<2048x128xf32>
    %4 = arith.maximumf %2, %3 : vector<2048x128xf32>
    %5 = arith.truncf %4 : vector<2048x128xf32> to vector<2048x128xbf16>
    %c0_4 = arith.constant 0 : index
    %c0_5 = arith.constant 0 : index
    %6 = vector.load %arg3[%c0_4, %c0_5] : memref<8x2048xbf16, #tpu.memory_space<vmem>>, vector<8x2048xbf16>
    %cst_6 = arith.constant dense<0.000000e+00> : vector<8x128xf32>
    %7 = tpu.matmul %6, %5, %cst_6 {dimension_numbers = #tpu.dot_dimension_numbers<[1], [0], [0], [1], [0, 0, 1, 1], [], []>} : vector<8x2048xbf16>, vector<2048x128xbf16>, vector<8x128xf32> -> vector<8x128xf32>
    %cst_7 = arith.constant 3.906250e-03 : f32
    %8 = vector.broadcast %cst_7 : f32 to vector<8x128xf32>
    %9 = arith.mulf %7, %8 : vector<8x128xf32>
    %10 = arith.truncf %9 : vector<8x128xf32> to vector<8x128xbf16>
    %c0_8 = arith.constant 0 : index
    %c0_9 = arith.constant 0 : index
    %11 = vector.load %arg4[%c0_8, %c0_9] : memref<128x256xbf16, #tpu.memory_space<vmem>>, vector<128x256xbf16>
    %cst_10 = arith.constant dense<0.000000e+00> : vector<8x256xf32>
    %12 = tpu.matmul %10, %11, %cst_10 {dimension_numbers = #tpu.dot_dimension_numbers<[1], [0], [0], [1], [0, 0, 1, 1], [], []>} : vector<8x128xbf16>, vector<128x256xbf16>, vector<8x256xf32> -> vector<8x256xf32>
    %c0_11 = arith.constant 0 : index
    %c0_12 = arith.constant 0 : index
    %13 = vector.load %arg5[%c0_11, %c0_12] : memref<1x256xf32, #tpu.memory_space<vmem>>, vector<1x256xf32>
    %14 = vector.broadcast %13 : vector<1x256xf32> to vector<8x256xf32>
    %15 = arith.addf %12, %14 : vector<8x256xf32>
    %cst_13 = arith.constant 0.000000e+00 : f32
    %16 = vector.broadcast %cst_13 : f32 to vector<8x256xf32>
    %17 = arith.maximumf %15, %16 : vector<8x256xf32>
    %18 = arith.truncf %17 : vector<8x256xf32> to vector<8x256xbf16>
    %c0_14 = arith.constant 0 : index
    %c0_15 = arith.constant 0 : index
    %19 = vector.load %arg6[%c0_14, %c0_15] : memref<256x128xbf16, #tpu.memory_space<vmem>>, vector<256x128xbf16>
    %cst_16 = arith.constant dense<0.000000e+00> : vector<8x128xf32>
    %20 = tpu.matmul %18, %19, %cst_16 {dimension_numbers = #tpu.dot_dimension_numbers<[1], [0], [0], [1], [0, 0, 1, 1], [], []>} : vector<8x256xbf16>, vector<256x128xbf16>, vector<8x128xf32> -> vector<8x128xf32>
    %c0_17 = arith.constant 0 : index
    %c0_18 = arith.constant 0 : index
    %21 = vector.load %arg7[%c0_17, %c0_18] : memref<1x128xf32, #tpu.memory_space<vmem>>, vector<1x128xf32>
    %22 = vector.broadcast %21 : vector<1x128xf32> to vector<8x128xf32>
    %23 = arith.addf %20, %22 : vector<8x128xf32>
    %cst_19 = arith.constant dense<0.000000e+00> : vector<8xf32>
    %24 = vector.multi_reduction <add>, %23, %cst_19 [1] : vector<8x128xf32> to vector<8xf32>
    %25 = vector.shape_cast %24 : vector<8xf32> to vector<8x1xf32>
    %cst_20 = arith.constant 1.280000e+02 : f32
    %26 = vector.broadcast %cst_20 : f32 to vector<8x1xf32>
    %27 = arith.divf %25, %26 : vector<8x1xf32>
    %28 = vector.broadcast %27 : vector<8x1xf32> to vector<8x128xf32>
    %29 = arith.subf %23, %28 : vector<8x128xf32>
    %30 = arith.mulf %29, %29 : vector<8x128xf32>
    %cst_21 = arith.constant dense<0.000000e+00> : vector<8xf32>
    %31 = vector.multi_reduction <add>, %30, %cst_21 [1] : vector<8x128xf32> to vector<8xf32>
    %32 = vector.shape_cast %31 : vector<8xf32> to vector<8x1xf32>
    %cst_22 = arith.constant 1.280000e+02 : f32
    %33 = vector.broadcast %cst_22 : f32 to vector<8x1xf32>
    %34 = arith.divf %32, %33 : vector<8x1xf32>
    %35 = vector.broadcast %27 : vector<8x1xf32> to vector<8x128xf32>
    %36 = arith.subf %23, %35 : vector<8x128xf32>
    %cst_23 = arith.constant 9.99999974E-6 : f32
    %37 = vector.broadcast %cst_23 : f32 to vector<8x1xf32>
    %38 = arith.addf %34, %37 : vector<8x1xf32>
    %39 = math.rsqrt %38 : vector<8x1xf32>
    %40 = vector.broadcast %39 : vector<8x1xf32> to vector<8x128xf32>
    %41 = arith.mulf %36, %40 : vector<8x128xf32>
    %c0_24 = arith.constant 0 : index
    %c0_25 = arith.constant 0 : index
    %42 = vector.load %arg8[%c0_24, %c0_25] : memref<1x128xf32, #tpu.memory_space<vmem>>, vector<1x128xf32>
    %43 = vector.broadcast %42 : vector<1x128xf32> to vector<8x128xf32>
    %44 = arith.mulf %41, %43 : vector<8x128xf32>
    %c0_26 = arith.constant 0 : index
    %c0_27 = arith.constant 0 : index
    %45 = vector.load %arg9[%c0_26, %c0_27] : memref<1x128xf32, #tpu.memory_space<vmem>>, vector<1x128xf32>
    %46 = vector.broadcast %45 : vector<1x128xf32> to vector<8x128xf32>
    %47 = arith.addf %44, %46 : vector<8x128xf32>
    %48 = arith.mulf %47, %47 : vector<8x128xf32>
    %cst_28 = arith.constant dense<0.000000e+00> : vector<8xf32>
    %49 = vector.multi_reduction <add>, %48, %cst_28 [1] : vector<8x128xf32> to vector<8xf32>
    %50 = vector.shape_cast %49 : vector<8xf32> to vector<8x1xf32>
    %cst_29 = arith.constant 1.000000e-24 : f32
    %51 = vector.broadcast %cst_29 : f32 to vector<8x1xf32>
    %52 = arith.maximumf %50, %51 : vector<8x1xf32>
    %53 = math.rsqrt %52 : vector<8x1xf32>
    %54 = vector.broadcast %53 : vector<8x1xf32> to vector<8x128xf32>
    %55 = arith.mulf %47, %54 : vector<8x128xf32>
    %c0_30 = arith.constant 0 : index
    %c0_31 = arith.constant 0 : index
    %56 = vector.load %arg10[%c0_30, %c0_31] : memref<8x128xf32, #tpu.memory_space<vmem>>, vector<8x128xf32>
    tpu.vector_store %arg10[%c0_30, %c0_31], %55 {strides = array<i32>} : memref<8x128xf32, #tpu.memory_space<vmem>>, vector<8x128xf32>,
    return
  }
  func.func @transform_0(%arg0: i32) -> (i32, i32) {
    %c0_i32 = arith.constant 0 : i32
    %c0_i32_0 = arith.constant 0 : i32
    return %arg0, %c0_i32 : i32, i32
  }
  func.func @transform_1(%arg0: i32) -> (i32, i32) {
    %c0_i32 = arith.constant 0 : i32
    %c0_i32_0 = arith.constant 0 : i32
    %c0_i32_1 = arith.constant 0 : i32
    return %c0_i32, %c0_i32_0 : i32, i32
  }
  func.func @transform_2(%arg0: i32) -> (i32, i32) {
    %c0_i32 = arith.constant 0 : i32
    %c0_i32_0 = arith.constant 0 : i32
    %c0_i32_1 = arith.constant 0 : i32
    return %c0_i32, %c0_i32_0 : i32, i32
  }
  func.func @transform_3(%arg0: i32) -> (i32, i32) {
    %c0_i32 = arith.constant 0 : i32
    %c0_i32_0 = arith.constant 0 : i32
    %c0_i32_1 = arith.constant 0 : i32
    return %c0_i32, %c0_i32_0 : i32, i32
  }
  func.func @transform_4(%arg0: i32) -> (i32, i32) {
    %c0_i32 = arith.constant 0 : i32
    %c0_i32_0 = arith.constant 0 : i32
    %c0_i32_1 = arith.constant 0 : i32
    return %c0_i32, %c0_i32_0 : i32, i32
  }
  func.func @transform_5(%arg0: i32) -> (i32, i32) {
    %c0_i32 = arith.constant 0 : i32
    %c0_i32_0 = arith.constant 0 : i32
    %c0_i32_1 = arith.constant 0 : i32
    return %c0_i32, %c0_i32_0 : i32, i32
  }
  func.func @transform_6(%arg0: i32) -> (i32, i32) {
    %c0_i32 = arith.constant 0 : i32
    %c0_i32_0 = arith.constant 0 : i32
    %c0_i32_1 = arith.constant 0 : i32
    return %c0_i32, %c0_i32_0 : i32, i32
  }
  func.func @transform_7(%arg0: i32) -> (i32, i32) {
    %c0_i32 = arith.constant 0 : i32
    %c0_i32_0 = arith.constant 0 : i32
    %c0_i32_1 = arith.constant 0 : i32
    return %c0_i32, %c0_i32_0 : i32, i32
  }
  func.func @transform_8(%arg0: i32) -> (i32, i32) {
    %c0_i32 = arith.constant 0 : i32
    %c0_i32_0 = arith.constant 0 : i32
    %c0_i32_1 = arith.constant 0 : i32
    return %c0_i32, %c0_i32_0 : i32, i32
  }
  func.func @transform_9(%arg0: i32) -> (i32, i32) {
    %c0_i32 = arith.constant 0 : i32
    %c0_i32_0 = arith.constant 0 : i32
    return %arg0, %c0_i32 : i32, i32
  }
}

</mosaic_0001>

<llo_original>
// kernel: visual_embedding_forward.1
$region0: #{visual_embedding_forward.1}
  #allocation0 [shape = 'u32[]', space=smem, size = 0x4, offset = 0x4, fixed_abs, tag = 'smem constant byte address 0x4 - core index']
  #allocation1 [shape = 'u32[72,128]{1,0:T(1,128)}', space=vmem, size = 0x9000, scoped, tag = 'internal scratch']
  %s0 = inlined_call_operand.vmem [shape: bf16[2048,64], index: 0, kind: input, shape index: {}]
  %s1 = inlined_call_operand.vmem [shape: bf16[64,128], index: 1, kind: input, shape index: {}]
  %s2 = inlined_call_operand.vmem [shape: bf16[8,2048], index: 2, kind: input, shape index: {}]
  %s3 = inlined_call_operand.vmem [shape: bf16[128,256], index: 3, kind: input, shape index: {}]
  %s4 = inlined_call_operand.vmem [shape: f32[1,256], index: 4, kind: input, shape index: {}]
  %s5 = inlined_call_operand.vmem [shape: bf16[256,128], index: 5, kind: input, shape index: {}]
  %s6 = inlined_call_operand.vmem [shape: f32[1,128], index: 6, kind: input, shape index: {}]
  %s7 = inlined_call_operand.vmem [shape: f32[1,128], index: 7, kind: input, shape index: {}]
  %s8 = inlined_call_operand.vmem [shape: f32[1,128], index: 8, kind: input, shape index: {}]
  %s9 = inlined_call_operand.vmem [shape: f32[8,128], index: 9, kind: output, shape index: {}]
  %s10 = sld [smem:[#allocation0]]
  $region46: #{visual_embedding_forward.1} parent=0
    _
  %s12 = ssub.s32 1, %s10
  %s13 = scalar_select 0, %s12, %s10
  // Predicated region
  $region2: #{visual_embedding_forward.1} parent=0 // pred_check
    _
  $region3: #{visual_embedding_forward.1} parent=0 // pred_check_branch
    %15 = sbr.rel (0) target = $region5
  $region4: #{visual_embedding_forward.1} parent=0 // pred_region
    _
  $region5: #{visual_embedding_forward.1} parent=0 // pred_fallthru
    _
  // Predicated region
  $region6: #{visual_embedding_forward.1} parent=0 // pred_check
    _
  $region7: #{visual_embedding_forward.1} parent=0 // pred_check_branch
    %17 = sbr.rel (0) target = $region9
  $region8: #{visual_embedding_forward.1} parent=0 // pred_region
    _
  $region9: #{visual_embedding_forward.1} parent=0 // pred_fallthru
    _
  // Predicated region
  $region10: #{visual_embedding_forward.1} parent=0 // pred_check
    _
  $region11: #{visual_embedding_forward.1} parent=0 // pred_check_branch
    %19 = sbr.rel (0) target = $region13
  $region12: #{visual_embedding_forward.1} parent=0 // pred_region
    _
  $region13: #{visual_embedding_forward.1} parent=0 // pred_fallthru
    _
  // Predicated region
  $region14: #{visual_embedding_forward.1} parent=0 // pred_check
    _
  $region15: #{visual_embedding_forward.1} parent=0 // pred_check_branch
    %21 = sbr.rel (0) target = $region17
  $region16: #{visual_embedding_forward.1} parent=0 // pred_region
    _
  $region17: #{visual_embedding_forward.1} parent=0 // pred_fallthru
    _
  // Predicated region
  $region18: #{visual_embedding_forward.1} parent=0 // pred_check
    _
  $region19: #{visual_embedding_forward.1} parent=0 // pred_check_branch
    %23 = sbr.rel (0) target = $region21
  $region20: #{visual_embedding_forward.1} parent=0 // pred_region
    _
  $region21: #{visual_embedding_forward.1} parent=0 // pred_fallthru
    _
  // Predicated region
  $region22: #{visual_embedding_forward.1} parent=0 // pred_check
    _
  $region23: #{visual_embedding_forward.1} parent=0 // pred_check_branch
    %25 = sbr.rel (0) target = $region25
  $region24: #{visual_embedding_forward.1} parent=0 // pred_region
    _
  $region25: #{visual_embedding_forward.1} parent=0 // pred_fallthru
    _
  // Predicated region
  $region26: #{visual_embedding_forward.1} parent=0 // pred_check
    _
  $region27: #{visual_embedding_forward.1} parent=0 // pred_check_branch
    %27 = sbr.rel (0) target = $region29
  $region28: #{visual_embedding_forward.1} parent=0 // pred_region
    _
  $region29: #{visual_embedding_forward.1} parent=0 // pred_fallthru
    _
  // Predicated region
  $region30: #{visual_embedding_forward.1} parent=0 // pred_check
    _
  $region31: #{visual_embedding_forward.1} parent=0 // pred_check_branch
    %29 = sbr.rel (0) target = $region33
  $region32: #{visual_embedding_forward.1} parent=0 // pred_region
    _
  $region33: #{visual_embedding_forward.1} parent=0 // pred_fallthru
    _
  // Predicated region
  $region34: #{visual_embedding_forward.1} parent=0 // pred_check
    _
  $region35: #{visual_embedding_forward.1} parent=0 // pred_check_branch
    %31 = sbr.rel (0) target = $region37
  $region36: #{visual_embedding_forward.1} parent=0 // pred_region
    _
  $region37: #{visual_embedding_forward.1} parent=0 // pred_fallthru
    _
  %v33 = vld [vmem:[%s0] sm:$0xf]
  %v34 = vld [vmem:[%s0 + $0x4] sm:$0xf]
  %v35 = vld [vmem:[%s0 + $0x8] sm:$0xf]
  %v36 = vld [vmem:[%s0 + $0xc] sm:$0xf]
  %v37 = vld [vmem:[%s0 + $0x10] sm:$0xf]
  %v38 = vld [vmem:[%s0 + $0x14] sm:$0xf]
  %v39 = vld [vmem:[%s0 + $0x18] sm:$0xf]
  %v40 = vld [vmem:[%s0 + $0x1c] sm:$0xf]
  %v41 = vld [vmem:[%s0 + $0x20] sm:$0xf]
  %v42 = vld [vmem:[%s0 + $0x24] sm:$0xf]
  %v43 = vld [vmem:[%s0 + $0x28] sm:$0xf]
  %v44 = vld [vmem:[%s0 + $0x2c] sm:$0xf]
  %v45 = vld [vmem:[%s0 + $0x30] sm:$0xf]
  %v46 = vld [vmem:[%s0 + $0x34] sm:$0xf]
  %v47 = vld [vmem:[%s0 + $0x38] sm:$0xf]
  %v48 = vld [vmem:[%s0 + $0x3c] sm:$0xf]
  %v49 = vld [vmem:[%s0 + $0x40] sm:$0xf]
  %v50 = vld [vmem:[%s0 + $0x44] sm:$0xf]
  %v51 = vld [vmem:[%s0 + $0x48] sm:$0xf]
  %v52 = vld [vmem:[%s0 + $0x4c] sm:$0xf]
  %v53 = vld [vmem:[%s0 + $0x50] sm:$0xf]
  %v54 = vld [vmem:[%s0 + $0x54] sm:$0xf]
  %v55 = vld [vmem:[%s0 + $0x58] sm:$0xf]
  %v56 = vld [vmem:[%s0 + $0x5c] sm:$0xf]
  %v57 = vld [vmem:[%s0 + $0x60] sm:$0xf]
  %v58 = vld [vmem:[%s0 + $0x64] sm:$0xf]
  %v59 = vld [vmem:[%s0 + $0x68] sm:$0xf]
  %v60 = vld [vmem:[%s0 + $0x6c] sm:$0xf]
  %v61 = vld [vmem:[%s0 + $0x70] sm:$0xf]
  %v62 = vld [vmem:[%s0 + $0x74] sm:$0xf]
  %v63 = vld [vmem:[%s0 + $0x78] sm:$0xf]
  %v64 = vld [vmem:[%s0 + $0x7c] sm:$0xf]
  %v65 = vld [vmem:[%s0 + $0x80] sm:$0xf]
  %v66 = vld [vmem:[%s0 + $0x84] sm:$0xf]
  %v67 = vld [vmem:[%s0 + $0x88] sm:$0xf]
  %v68 = vld [vmem:[%s0 + $0x8c] sm:$0xf]
  %v69 = vld [vmem:[%s0 + $0x90] sm:$0xf]
  %v70 = vld [vmem:[%s0 + $0x94] sm:$0xf]
  %v71 = vld [vmem:[%s0 + $0x98] sm:$0xf]
  %v72 = vld [vmem:[%s0 + $0x9c] sm:$0xf]
  %v73 = vld [vmem:[%s0 + $0xa0] sm:$0xf]
  %v74 = vld [vmem:[%s0 + $0xa4] sm:$0xf]
  %v75 = vld [vmem:[%s0 + $0xa8] sm:$0xf]
  %v76 = vld [vmem:[%s0 + $0xac] sm:$0xf]
  %v77 = vld [vmem:[%s0 + $0xb0] sm:$0xf]
  %v78 = vld [vmem:[%s0 + $0xb4] sm:$0xf]
  %v79 = vld [vmem:[%s0 + $0xb8] sm:$0xf]
  %v80 = vld [vmem:[%s0 + $0xbc] sm:$0xf]
  %v81 = vld [vmem:[%s0 + $0xc0] sm:$0xf]
  %v82 = vld [vmem:[%s0 + $0xc4] sm:$0xf]
  %v83 = vld [vmem:[%s0 + $0xc8] sm:$0xf]
  %v84 = vld [vmem:[%s0 + $0xcc] sm:$0xf]
  %v85 = vld [vmem:[%s0 + $0xd0] sm:$0xf]
  %v86 = vld [vmem:[%s0 + $0xd4] sm:$0xf]
  %v87 = vld [vmem:[%s0 + $0xd8] sm:$0xf]
  %v88 = vld [vmem:[%s0 + $0xdc] sm:$0xf]
  %v89 = vld [vmem:[%s0 + $0xe0] sm:$0xf]
  %v90 = vld [vmem:[%s0 + $0xe4] sm:$0xf]
  %v91 = vld [vmem:[%s0 + $0xe8] sm:$0xf]
  %v92 = vld [vmem:[%s0 + $0xec] sm:$0xf]
  %v93 = vld [vmem:[%s0 + $0xf0] sm:$0xf]
  %v94 = vld [vmem:[%s0 + $0xf4] sm:$0xf]
  %v95 = vld [vmem:[%s0 + $0xf8] sm:$0xf]
  %v96 = vld [vmem:[%s0 + $0xfc] sm:$0xf]
  %v97 = vld [vmem:[%s0 + $0x100] sm:$0xf]
  %v98 = vld [vmem:[%s0 + $0x104] sm:$0xf]
  %v99 = vld [vmem:[%s0 + $0x108] sm:$0xf]
  %v100 = vld [vmem:[%s0 + $0x10c] sm:$0xf]
  %v101 = vld [vmem:[%s0 + $0x110] sm:$0xf]
  %v102 = vld [vmem:[%s0 + $0x114] sm:$0xf]
  %v103 = vld [vmem:[%s0 + $0x118] sm:$0xf]
  %v104 = vld [vmem:[%s0 + $0x11c] sm:$0xf]
  %v105 = vld [vmem:[%s0 + $0x120] sm:$0xf]
  %v106 = vld [vmem:[%s0 + $0x124] sm:$0xf]
  %v107 = vld [vmem:[%s0 + $0x128] sm:$0xf]
  %v108 = vld [vmem:[%s0 + $0x12c] sm:$0xf]
  %v109 = vld [vmem:[%s0 + $0x130] sm:$0xf]
  %v110 = vld [vmem:[%s0 + $0x134] sm:$0xf]
  %v111 = vld [vmem:[%s0 + $0x138] sm:$0xf]
  %v112 = vld [vmem:[%s0 + $0x13c] sm:$0xf]
  %v113 = vld [vmem:[%s0 + $0x140] sm:$0xf]
  %v114 = vld [vmem:[%s0 + $0x144] sm:$0xf]
  %v115 = vld [vmem:[%s0 + $0x148] sm:$0xf]
  %v116 = vld [vmem:[%s0 + $0x14c] sm:$0xf]
  %v117 = vld [vmem:[%s0 + $0x150] sm:$0xf]
  %v118 = vld [vmem:[%s0 + $0x154] sm:$0xf]
  %v119 = vld [vmem:[%s0 + $0x158] sm:$0xf]
  %v120 = vld [vmem:[%s0 + $0x15c] sm:$0xf]
  %v121 = vld [vmem:[%s0 + $0x160] sm:$0xf]
  %v122 = vld [vmem:[%s0 + $0x164] sm:$0xf]
  %v123 = vld [vmem:[%s0 + $0x168] sm:$0xf]
  %v124 = vld [vmem:[%s0 + $0x16c] sm:$0xf]
  %v125 = vld [vmem:[%s0 + $0x170] sm:$0xf]
  %v126 = vld [vmem:[%s0 + $0x174] sm:$0xf]
  %v127 = vld [vmem:[%s0 + $0x178] sm:$0xf]
  %v128 = vld [vmem:[%s0 + $0x17c] sm:$0xf]
  %v129 = vld [vmem:[%s0 + $0x180] sm:$0xf]
  %v130 = vld [vmem:[%s0 + $0x184] sm:$0xf]
  %v131 = vld [vmem:[%s0 + $0x188] sm:$0xf]
  %v132 = vld [vmem:[%s0 + $0x18c] sm:$0xf]
  %v133 = vld [vmem:[%s0 + $0x190] sm:$0xf]
  %v134 = vld [vmem:[%s0 + $0x194] sm:$0xf]
  %v135 = vld [vmem:[%s0 + $0x198] sm:$0xf]
  %v136 = vld [vmem:[%s0 + $0x19c] sm:$0xf]
  %v137 = vld [vmem:[%s0 + $0x1a0] sm:$0xf]
  %v138 = vld [vmem:[%s0 + $0x1a4] sm:$0xf]
  %v139 = vld [vmem:[%s0 + $0x1a8] sm:$0xf]
  %v140 = vld [vmem:[%s0 + $0x1ac] sm:$0xf]
  %v141 = vld [vmem:[%s0 + $0x1b0] sm:$0xf]
  %v142 = vld [vmem:[%s0 + $0x1b4] sm:$0xf]
  %v143 = vld [vmem:[%s0 + $0x1b8] sm:$0xf]
  %v144 = vld [vmem:[%s0 + $0x1bc] sm:$0xf]
  %v145 = vld [vmem:[%s0 + $0x1c0] sm:$0xf]
  %v146 = vld [vmem:[%s0 + $0x1c4] sm:$0xf]
  %v147 = vld [vmem:[%s0 + $0x1c8] sm:$0xf]
  %v148 = vld [vmem:[%s0 + $0x1cc] sm:$0xf]
  %v149 = vld [vmem:[%s0 + $0x1d0] sm:$0xf]
  %v150 = vld [vmem:[%s0 + $0x1d4] sm:$0xf]
  %v151 = vld [vmem:[%s0 + $0x1d8] sm:$0xf]
  %v152 = vld [vmem:[%s0 + $0x1dc] sm:$0xf]
  %v153 = vld [vmem:[%s0 + $0x1e0] sm:$0xf]
  %v154 = vld [vmem:[%s0 + $0x1e4] sm:$0xf]
  %v155 = vld [vmem:[%s0 + $0x1e8] sm:$0xf]
  %v156 = vld [vmem:[%s0 + $0x1ec] sm:$0xf]
  %v157 = vld [vmem:[%s0 + $0x1f0] sm:$0xf]
  %v158 = vld [vmem:[%s0 + $0x1f4] sm:$0xf]
  %v159 = vld [vmem:[%s0 + $0x1f8] sm:$0xf]
  %v160 = vld [vmem:[%s0 + $0x1fc] sm:$0xf]
  %v161 = vld [vmem:[%s0 + $0x200] sm:$0xf]
  %v162 = vld [vmem:[%s0 + $0x204] sm:$0xf]
  %v163 = vld [vmem:[%s0 + $0x208] sm:$0xf]
  %v164 = vld [vmem:[%s0 + $0x20c] sm:$0xf]
  %v165 = vld [vmem:[%s0 + $0x210] sm:$0xf]
  %v166 = vld [vmem:[%s0 + $0x214] sm:$0xf]
  %v167 = vld [vmem:[%s0 + $0x218] sm:$0xf]
  %v168 = vld [vmem:[%s0 + $0x21c] sm:$0xf]
  %v169 = vld [vmem:[%s0 + $0x220] sm:$0xf]
  %v170 = vld [vmem:[%s0 + $0x224] sm:$0xf]
  %v171 = vld [vmem:[%s0 + $0x228] sm:$0xf]
  %v172 = vld [vmem:[%s0 + $0x22c] sm:$0xf]
  %v173 = vld [vmem:[%s0 + $0x230] sm:$0xf]
  %v174 = vld [vmem:[%s0 + $0x234] sm:$0xf]
  %v175 = vld [vmem:[%s0 + $0x238] sm:$0xf]
  %v176 = vld [vmem:[%s0 + $0x23c] sm:$0xf]
  %v177 = vld [vmem:[%s0 + $0x240] sm:$0xf]
  %v178 = vld [vmem:[%s0 + $0x244] sm:$0xf]
  %v179 = vld [vmem:[%s0 + $0x248] sm:$0xf]
  %v180 = vld [vmem:[%s0 + $0x24c] sm:$0xf]
  %v181 = vld [vmem:[%s0 + $0x250] sm:$0xf]
  %v182 = vld [vmem:[%s0 + $0x254] sm:$0xf]
  %v183 = vld [vmem:[%s0 + $0x258] sm:$0xf]
  %v184 = vld [vmem:[%s0 + $0x25c] sm:$0xf]
  %v185 = vld [vmem:[%s0 + $0x260] sm:$0xf]
  %v186 = vld [vmem:[%s0 + $0x264] sm:$0xf]
  %v187 = vld [vmem:[%s0 + $0x268] sm:$0xf]
  %v188 = vld [vmem:[%s0 + $0x26c] sm:$0xf]
  %v189 = vld [vmem:[%s0 + $0x270] sm:$0xf]
  %v190 = vld [vmem:[%s0 + $0x274] sm:$0xf]
  %v191 = vld [vmem:[%s0 + $0x278] sm:$0xf]
  %v192 = vld [vmem:[%s0 + $0x27c] sm:$0xf]
  %v193 = vld [vmem:[%s0 + $0x280] sm:$0xf]
  %v194 = vld [vmem:[%s0 + $0x284] sm:$0xf]
  %v195 = vld [vmem:[%s0 + $0x288] sm:$0xf]
  %v196 = vld [vmem:[%s0 + $0x28c] sm:$0xf]
  %v197 = vld [vmem:[%s0 + $0x290] sm:$0xf]
  %v198 = vld [vmem:[%s0 + $0x294] sm:$0xf]
  %v199 = vld [vmem:[%s0 + $0x298] sm:$0xf]
  %v200 = vld [vmem:[%s0 + $0x29c] sm:$0xf]
  %v201 = vld [vmem:[%s0 + $0x2a0] sm:$0xf]
  %v202 = vld [vmem:[%s0 + $0x2a4] sm:$0xf]
  %v203 = vld [vmem:[%s0 + $0x2a8] sm:$0xf]
  %v204 = vld [vmem:[%s0 + $0x2ac] sm:$0xf]
  %v205 = vld [vmem:[%s0 + $0x2b0] sm:$0xf]
  %v206 = vld [vmem:[%s0 + $0x2b4] sm:$0xf]
  %v207 = vld [vmem:[%s0 + $0x2b8] sm:$0xf]
  %v208 = vld [vmem:[%s0 + $0x2bc] sm:$0xf]
  %v209 = vld [vmem:[%s0 + $0x2c0] sm:$0xf]
  %v210 = vld [vmem:[%s0 + $0x2c4] sm:$0xf]
  %v211 = vld [vmem:[%s0 + $0x2c8] sm:$0xf]
  %v212 = vld [vmem:[%s0 + $0x2cc] sm:$0xf]
  %v213 = vld [vmem:[%s0 + $0x2d0] sm:$0xf]
  %v214 = vld [vmem:[%s0 + $0x2d4] sm:$0xf]
  %v215 = vld [vmem:[%s0 + $0x2d8] sm:$0xf]
  %v216 = vld [vmem:[%s0 + $0x2dc] sm:$0xf]
  %v217 = vld [vmem:[%s0 + $0x2e0] sm:$0xf]
  %v218 = vld [vmem:[%s0 + $0x2e4] sm:$0xf]
  %v219 = vld [vmem:[%s0 + $0x2e8] sm:$0xf]
  %v220 = vld [vmem:[%s0 + $0x2ec] sm:$0xf]
  %v221 = vld [vmem:[%s0 + $0x2f0] sm:$0xf]
  %v222 = vld [vmem:[%s0 + $0x2f4] sm:$0xf]
  %v223 = vld [vmem:[%s0 + $0x2f8] sm:$0xf]
  %v224 = vld [vmem:[%s0 + $0x2fc] sm:$0xf]
  %v225 = vld [vmem:[%s0 + $0x300] sm:$0xf]
  %v226 = vld [vmem:[%s0 + $0x304] sm:$0xf]
  %v227 = vld [vmem:[%s0 + $0x308] sm:$0xf]
  %v228 = vld [vmem:[%s0 + $0x30c] sm:$0xf]
  %v229 = vld [vmem:[%s0 + $0x310] sm:$0xf]
  %v230 = vld [vmem:[%s0 + $0x314] sm:$0xf]
  %v231 = vld [vmem:[%s0 + $0x318] sm:$0xf]
  %v232 = vld [vmem:[%s0 + $0x31c] sm:$0xf]
  %v233 = vld [vmem:[%s0 + $0x320] sm:$0xf]
  %v234 = vld [vmem:[%s0 + $0x324] sm:$0xf]
  %v235 = vld [vmem:[%s0 + $0x328] sm:$0xf]
  %v236 = vld [vmem:[%s0 + $0x32c] sm:$0xf]
  %v237 = vld [vmem:[%s0 + $0x330] sm:$0xf]
  %v238 = vld [vmem:[%s0 + $0x334] sm:$0xf]
  %v239 = vld [vmem:[%s0 + $0x338] sm:$0xf]
  %v240 = vld [vmem:[%s0 + $0x33c] sm:$0xf]
  %v241 = vld [vmem:[%s0 + $0x340] sm:$0xf]
  %v242 = vld [vmem:[%s0 + $0x344] sm:$0xf]
  %v243 = vld [vmem:[%s0 + $0x348] sm:$0xf]
  %v244 = vld [vmem:[%s0 + $0x34c] sm:$0xf]
  %v245 = vld [vmem:[%s0 + $0x350] sm:$0xf]
  %v246 = vld [vmem:[%s0 + $0x354] sm:$0xf]
  %v247 = vld [vmem:[%s0 + $0x358] sm:$0xf]
  %v248 = vld [vmem:[%s0 + $0x35c] sm:$0xf]
  %v249 = vld [vmem:[%s0 + $0x360] sm:$0xf]
  %v250 = vld [vmem:[%s0 + $0x364] sm:$0xf]
  %v251 = vld [vmem:[%s0 + $0x368] sm:$0xf]
  %v252 = vld [vmem:[%s0 + $0x36c] sm:$0xf]
  %v253 = vld [vmem:[%s0 + $0x370] sm:$0xf]
  %v254 = vld [vmem:[%s0 + $0x374] sm:$0xf]
  %v255 = vld [vmem:[%s0 + $0x378] sm:$0xf]
  %v256 = vld [vmem:[%s0 + $0x37c] sm:$0xf]
  %v257 = vld [vmem:[%s0 + $0x380] sm:$0xf]
  %v258 = vld [vmem:[%s0 + $0x384] sm:$0xf]
  %v259 = vld [vmem:[%s0 + $0x388] sm:$0xf]
  %v260 = vld [vmem:[%s0 + $0x38c] sm:$0xf]
  %v261 = vld [vmem:[%s0 + $0x390] sm:$0xf]
  %v262 = vld [vmem:[%s0 + $0x394] sm:$0xf]
  %v263 = vld [vmem:[%s0 + $0x398] sm:$0xf]
  %v264 = vld [vmem:[%s0 + $0x39c] sm:$0xf]
  %v265 = vld [vmem:[%s0 + $0x3a0] sm:$0xf]
  %v266 = vld [vmem:[%s0 + $0x3a4] sm:$0xf]
  %v267 = vld [vmem:[%s0 + $0x3a8] sm:$0xf]
  %v268 = vld [vmem:[%s0 + $0x3ac] sm:$0xf]
  %v269 = vld [vmem:[%s0 + $0x3b0] sm:$0xf]
  %v270 = vld [vmem:[%s0 + $0x3b4] sm:$0xf]
  %v271 = vld [vmem:[%s0 + $0x3b8] sm:$0xf]
  %v272 = vld [vmem:[%s0 + $0x3bc] sm:$0xf]
  %v273 = vld [vmem:[%s0 + $0x3c0] sm:$0xf]
  %v274 = vld [vmem:[%s0 + $0x3c4] sm:$0xf]
  %v275 = vld [vmem:[%s0 + $0x3c8] sm:$0xf]
  %v276 = vld [vmem:[%s0 + $0x3cc] sm:$0xf]
  %v277 = vld [vmem:[%s0 + $0x3d0] sm:$0xf]
  %v278 = vld [vmem:[%s0 + $0x3d4] sm:$0xf]
  %v279 = vld [vmem:[%s0 + $0x3d8] sm:$0xf]
  %v280 = vld [vmem:[%s0 + $0x3dc] sm:$0xf]
  %v281 = vld [vmem:[%s0 + $0x3e0] sm:$0xf]
  %v282 = vld [vmem:[%s0 + $0x3e4] sm:$0xf]
  %v283 = vld [vmem:[%s0 + $0x3e8] sm:$0xf]
  %v284 = vld [vmem:[%s0 + $0x3ec] sm:$0xf]
  %v285 = vld [vmem:[%s0 + $0x3f0] sm:$0xf]
  %v286 = vld [vmem:[%s0 + $0x3f4] sm:$0xf]
  %v287 = vld [vmem:[%s0 + $0x3f8] sm:$0xf]
  %v288 = vld [vmem:[%s0 + $0x3fc] sm:$0xf]
  %v289 = vld [vmem:[%s1] sm:$0xf]
  %v290 = vld [vmem:[%s1 + $0x4] sm:$0xf]
  %v291 = vld [vmem:[%s1 + $0x8] sm:$0xf]
  %v292 = vld [vmem:[%s1 + $0xc] sm:$0xf]
  %v293 = vld [vmem:[%s1 + $0x10] sm:$0xf]
  %v294 = vld [vmem:[%s1 + $0x14] sm:$0xf]
  %v295 = vld [vmem:[%s1 + $0x18] sm:$0xf]
  %v296 = vld [vmem:[%s1 + $0x1c] sm:$0xf]
  %v553 = vunpack.c.l.b16 %v33
  %v554 = vunpack.c.l.b16 %v34
  %v555 = vunpack.c.l.b16 %v35
  %v556 = vunpack.c.l.b16 %v36
  %v557 = vunpack.c.l.b16 %v37
  %v558 = vunpack.c.l.b16 %v38
  %v559 = vunpack.c.l.b16 %v39
  %v560 = vunpack.c.l.b16 %v40
  %v561 = vunpack.c.l.b16 %v41
  %v562 = vunpack.c.l.b16 %v42
  %v563 = vunpack.c.l.b16 %v43
  %v564 = vunpack.c.l.b16 %v44
  %v565 = vunpack.c.l.b16 %v45
  %v566 = vunpack.c.l.b16 %v46
  %v567 = vunpack.c.l.b16 %v47
  %v568 = vunpack.c.l.b16 %v48
  %v569 = vunpack.c.l.b16 %v49
  %v570 = vunpack.c.l.b16 %v50
  %v571 = vunpack.c.l.b16 %v51
  %v572 = vunpack.c.l.b16 %v52
  %v573 = vunpack.c.l.b16 %v53
  %v574 = vunpack.c.l.b16 %v54
  %v575 = vunpack.c.l.b16 %v55
  %v576 = vunpack.c.l.b16 %v56
  %v577 = vunpack.c.l.b16 %v57
  %v578 = vunpack.c.l.b16 %v58
  %v579 = vunpack.c.l.b16 %v59
  %v580 = vunpack.c.l.b16 %v60
  %v581 = vunpack.c.l.b16 %v61
  %v582 = vunpack.c.l.b16 %v62
  %v583 = vunpack.c.l.b16 %v63
  %v584 = vunpack.c.l.b16 %v64
  %v585 = vunpack.c.l.b16 %v65
  %v586 = vunpack.c.l.b16 %v66
  %v587 = vunpack.c.l.b16 %v67
  %v588 = vunpack.c.l.b16 %v68
  %v589 = vunpack.c.l.b16 %v69
  %v590 = vunpack.c.l.b16 %v70
  %v591 = vunpack.c.l.b16 %v71
  %v592 = vunpack.c.l.b16 %v72
  %v593 = vunpack.c.l.b16 %v73
  %v594 = vunpack.c.l.b16 %v74
  %v595 = vunpack.c.l.b16 %v75
  %v596 = vunpack.c.l.b16 %v76
  %v597 = vunpack.c.l.b16 %v77
  %v598 = vunpack.c.l.b16 %v78
  %v599 = vunpack.c.l.b16 %v79
  %v600 = vunpack.c.l.b16 %v80
  %v601 = vunpack.c.l.b16 %v81
  %v602 = vunpack.c.l.b16 %v82
  %v603 = vunpack.c.l.b16 %v83
  %v604 = vunpack.c.l.b16 %v84
  %v605 = vunpack.c.l.b16 %v85
  %v606 = vunpack.c.l.b16 %v86
  %v607 = vunpack.c.l.b16 %v87
  %v608 = vunpack.c.l.b16 %v88
  %v609 = vunpack.c.l.b16 %v89
  %v610 = vunpack.c.l.b16 %v90
  %v611 = vunpack.c.l.b16 %v91
  %v612 = vunpack.c.l.b16 %v92
  %v613 = vunpack.c.l.b16 %v93
  %v614 = vunpack.c.l.b16 %v94
  %v615 = vunpack.c.l.b16 %v95
  %v616 = vunpack.c.l.b16 %v96
  %v617 = vunpack.c.l.b16 %v97
  %v618 = vunpack.c.l.b16 %v98
  %v619 = vunpack.c.l.b16 %v99
  %v620 = vunpack.c.l.b16 %v100
  %v621 = vunpack.c.l.b16 %v101
  %v622 = vunpack.c.l.b16 %v102
  %v623 = vunpack.c.l.b16 %v103
  %v624 = vunpack.c.l.b16 %v104
  %v625 = vunpack.c.l.b16 %v105
  %v626 = vunpack.c.l.b16 %v106
  %v627 = vunpack.c.l.b16 %v107
  %v628 = vunpack.c.l.b16 %v108
  %v629 = vunpack.c.l.b16 %v109
  %v630 = vunpack.c.l.b16 %v110
  %v631 = vunpack.c.l.b16 %v111
  %v632 = vunpack.c.l.b16 %v112
  %v633 = vunpack.c.l.b16 %v113
  %v634 = vunpack.c.l.b16 %v114
  %v635 = vunpack.c.l.b16 %v115
  %v636 = vunpack.c.l.b16 %v116
  %v637 = vunpack.c.l.b16 %v117
  %v638 = vunpack.c.l.b16 %v118
  %v639 = vunpack.c.l.b16 %v119
  %v640 = vunpack.c.l.b16 %v120
  %v641 = vunpack.c.l.b16 %v121
  %v642 = vunpack.c.l.b16 %v122
  %v643 = vunpack.c.l.b16 %v123
  %v644 = vunpack.c.l.b16 %v124
  %v645 = vunpack.c.l.b16 %v125
  %v646 = vunpack.c.l.b16 %v126
  %v647 = vunpack.c.l.b16 %v127
  %v648 = vunpack.c.l.b16 %v128
  %v649 = vunpack.c.l.b16 %v129
  %v650 = vunpack.c.l.b16 %v130
  %v651 = vunpack.c.l.b16 %v131
  %v652 = vunpack.c.l.b16 %v132
  %v653 = vunpack.c.l.b16 %v133
  %v654 = vunpack.c.l.b16 %v134
  %v655 = vunpack.c.l.b16 %v135
  %v656 = vunpack.c.l.b16 %v136
  %v657 = vunpack.c.l.b16 %v137
  %v658 = vunpack.c.l.b16 %v138
  %v659 = vunpack.c.l.b16 %v139
  %v660 = vunpack.c.l.b16 %v140
  %v661 = vunpack.c.l.b16 %v141
  %v662 = vunpack.c.l.b16 %v142
  %v663 = vunpack.c.l.b16 %v143
  %v664 = vunpack.c.l.b16 %v144
  %v665 = vunpack.c.l.b16 %v145
  %v666 = vunpack.c.l.b16 %v146
  %v667 = vunpack.c.l.b16 %v147
  %v668 = vunpack.c.l.b16 %v148
  %v669 = vunpack.c.l.b16 %v149
  %v670 = vunpack.c.l.b16 %v150
  %v671 = vunpack.c.l.b16 %v151
  %v672 = vunpack.c.l.b16 %v152
  %v673 = vunpack.c.l.b16 %v153
  %v674 = vunpack.c.l.b16 %v154
  %v675 = vunpack.c.l.b16 %v155
  %v676 = vunpack.c.l.b16 %v156
  %v677 = vunpack.c.l.b16 %v157
  %v678 = vunpack.c.l.b16 %v158
  %v679 = vunpack.c.l.b16 %v159
  %v680 = vunpack.c.l.b16 %v160
  %v681 = vunpack.c.l.b16 %v161
  %v682 = vunpack.c.l.b16 %v162
  %v683 = vunpack.c.l.b16 %v163
  %v684 = vunpack.c.l.b16 %v164
  %v685 = vunpack.c.l.b16 %v165
  %v686 = vunpack.c.l.b16 %v166
  %v687 = vunpack.c.l.b16 %v167
  %v688 = vunpack.c.l.b16 %v168
  %v689 = vunpack.c.l.b16 %v169
  %v690 = vunpack.c.l.b16 %v170
  %v691 = vunpack.c.l.b16 %v171
  %v692 = vunpack.c.l.b16 %v172
  %v693 = vunpack.c.l.b16 %v173
  %v694 = vunpack.c.l.b16 %v174
  %v695 = vunpack.c.l.b16 %v175
  %v696 = vunpack.c.l.b16 %v176
  %v697 = vunpack.c.l.b16 %v177
  %v698 = vunpack.c.l.b16 %v178
  %v699 = vunpack.c.l.b16 %v179
  %v700 = vunpack.c.l.b16 %v180
  %v701 = vunpack.c.l.b16 %v181
  %v702 = vunpack.c.l.b16 %v182
  %v703 = vunpack.c.l.b16 %v183
  %v704 = vunpack.c.l.b16 %v184
  %v705 = vunpack.c.l.b16 %v185
  %v706 = vunpack.c.l.b16 %v186
  %v707 = vunpack.c.l.b16 %v187
  %v708 = vunpack.c.l.b16 %v188
  %v709 = vunpack.c.l.b16 %v189
  %v710 = vunpack.c.l.b16 %v190
  %v711 = vunpack.c.l.b16 %v191
  %v712 = vunpack.c.l.b16 %v192
  %v713 = vunpack.c.l.b16 %v193
  %v714 = vunpack.c.l.b16 %v194
  %v715 = vunpack.c.l.b16 %v195
  %v716 = vunpack.c.l.b16 %v196
  %v717 = vunpack.c.l.b16 %v197
  %v718 = vunpack.c.l.b16 %v198
  %v719 = vunpack.c.l.b16 %v199
  %v720 = vunpack.c.l.b16 %v200
  %v721 = vunpack.c.l.b16 %v201
  %v722 = vunpack.c.l.b16 %v202
  %v723 = vunpack.c.l.b16 %v203
  %v724 = vunpack.c.l.b16 %v204
  %v725 = vunpack.c.l.b16 %v205
  %v726 = vunpack.c.l.b16 %v206
  %v727 = vunpack.c.l.b16 %v207
  %v728 = vunpack.c.l.b16 %v208
  %v729 = vunpack.c.l.b16 %v209
  %v730 = vunpack.c.l.b16 %v210
  %v731 = vunpack.c.l.b16 %v211
  %v732 = vunpack.c.l.b16 %v212
  %v733 = vunpack.c.l.b16 %v213
  %v734 = vunpack.c.l.b16 %v214
  %v735 = vunpack.c.l.b16 %v215
  %v736 = vunpack.c.l.b16 %v216
  %v737 = vunpack.c.l.b16 %v217
  %v738 = vunpack.c.l.b16 %v218
  %v739 = vunpack.c.l.b16 %v219
  %v740 = vunpack.c.l.b16 %v220
  %v741 = vunpack.c.l.b16 %v221
  %v742 = vunpack.c.l.b16 %v222
  %v743 = vunpack.c.l.b16 %v223
  %v744 = vunpack.c.l.b16 %v224
  %v745 = vunpack.c.l.b16 %v225
  %v746 = vunpack.c.l.b16 %v226
  %v747 = vunpack.c.l.b16 %v227
  %v748 = vunpack.c.l.b16 %v228
  %v749 = vunpack.c.l.b16 %v229
  %v750 = vunpack.c.l.b16 %v230
  %v751 = vunpack.c.l.b16 %v231
  %v752 = vunpack.c.l.b16 %v232
  %v753 = vunpack.c.l.b16 %v233
  %v754 = vunpack.c.l.b16 %v234
  %v755 = vunpack.c.l.b16 %v235
  %v756 = vunpack.c.l.b16 %v236
  %v757 = vunpack.c.l.b16 %v237
  %v758 = vunpack.c.l.b16 %v238
  %v759 = vunpack.c.l.b16 %v239
  %v760 = vunpack.c.l.b16 %v240
  %v761 = vunpack.c.l.b16 %v241
  %v762 = vunpack.c.l.b16 %v242
  %v763 = vunpack.c.l.b16 %v243
  %v764 = vunpack.c.l.b16 %v244
  %v765 = vunpack.c.l.b16 %v245
  %v766 = vunpack.c.l.b16 %v246
  %v767 = vunpack.c.l.b16 %v247
  %v768 = vunpack.c.l.b16 %v248
  %v769 = vunpack.c.l.b16 %v249
  %v770 = vunpack.c.l.b16 %v250
  %v771 = vunpack.c.l.b16 %v251
  %v772 = vunpack.c.l.b16 %v252
  %v773 = vunpack.c.l.b16 %v253
  %v774 = vunpack.c.l.b16 %v254
  %v775 = vunpack.c.l.b16 %v255
  %v776 = vunpack.c.l.b16 %v256
  %v777 = vunpack.c.l.b16 %v257
  %v778 = vunpack.c.l.b16 %v258
  %v779 = vunpack.c.l.b16 %v259
  %v780 = vunpack.c.l.b16 %v260
  %v781 = vunpack.c.l.b16 %v261
  %v782 = vunpack.c.l.b16 %v262
  %v783 = vunpack.c.l.b16 %v263
  %v784 = vunpack.c.l.b16 %v264
  %v785 = vunpack.c.l.b16 %v265
  %v786 = vunpack.c.l.b16 %v266
  %v787 = vunpack.c.l.b16 %v267
  %v788 = vunpack.c.l.b16 %v268
  %v789 = vunpack.c.l.b16 %v269
  %v790 = vunpack.c.l.b16 %v270
  %v791 = vunpack.c.l.b16 %v271
  %v792 = vunpack.c.l.b16 %v272
  %v793 = vunpack.c.l.b16 %v273
  %v794 = vunpack.c.l.b16 %v274
  %v795 = vunpack.c.l.b16 %v275
  %v796 = vunpack.c.l.b16 %v276
  %v797 = vunpack.c.l.b16 %v277
  %v798 = vunpack.c.l.b16 %v278
  %v799 = vunpack.c.l.b16 %v279
  %v800 = vunpack.c.l.b16 %v280
  %v801 = vunpack.c.l.b16 %v281
  %v802 = vunpack.c.l.b16 %v282
  %v803 = vunpack.c.l.b16 %v283
  %v804 = vunpack.c.l.b16 %v284
  %v805 = vunpack.c.l.b16 %v285
  %v806 = vunpack.c.l.b16 %v286
  %v807 = vunpack.c.l.b16 %v287
  %v808 = vunpack.c.l.b16 %v288
  %v809 = vpack.c.b16 %v554, %v553
  %v810 = vpack.c.b16 %v556, %v555
  %v811 = vpack.c.b16 %v558, %v557
  %v812 = vpack.c.b16 %v560, %v559
  %v813 = vpack.c.b16 %v562, %v561
  %v814 = vpack.c.b16 %v564, %v563
  %v815 = vpack.c.b16 %v566, %v565
  %v816 = vpack.c.b16 %v568, %v567
  %v817 = vpack.c.b16 %v570, %v569
  %v818 = vpack.c.b16 %v572, %v571
  %v819 = vpack.c.b16 %v574, %v573
  %v820 = vpack.c.b16 %v576, %v575
  %v821 = vpack.c.b16 %v578, %v577
  %v822 = vpack.c.b16 %v580, %v579
  %v823 = vpack.c.b16 %v582, %v581
  %v824 = vpack.c.b16 %v584, %v583
  %v825 = vpack.c.b16 %v586, %v585
  %v826 = vpack.c.b16 %v588, %v587
  %v827 = vpack.c.b16 %v590, %v589
  %v828 = vpack.c.b16 %v592, %v591
  %v829 = vpack.c.b16 %v594, %v593
  %v830 = vpack.c.b16 %v596, %v595
  %v831 = vpack.c.b16 %v598, %v597
  %v832 = vpack.c.b16 %v600, %v599
  %v833 = vpack.c.b16 %v602, %v601
  %v834 = vpack.c.b16 %v604, %v603
  %v835 = vpack.c.b16 %v606, %v605
  %v836 = vpack.c.b16 %v608, %v607
  %v837 = vpack.c.b16 %v610, %v609
  %v838 = vpack.c.b16 %v612, %v611
  %v839 = vpack.c.b16 %v614, %v613
  %v840 = vpack.c.b16 %v616, %v615
  %v841 = vpack.c.b16 %v618, %v617
  %v842 = vpack.c.b16 %v620, %v619
  %v843 = vpack.c.b16 %v622, %v621
  %v844 = vpack.c.b16 %v624, %v623
  %v845 = vpack.c.b16 %v626, %v625
  %v846 = vpack.c.b16 %v628, %v627
  %v847 = vpack.c.b16 %v630, %v629
  %v848 = vpack.c.b16 %v632, %v631
  %v849 = vpack.c.b16 %v634, %v633
  %v850 = vpack.c.b16 %v636, %v635
  %v851 = vpack.c.b16 %v638, %v637
  %v852 = vpack.c.b16 %v640, %v639
  %v853 = vpack.c.b16 %v642, %v641
  %v854 = vpack.c.b16 %v644, %v643
  %v855 = vpack.c.b16 %v646, %v645
  %v856 = vpack.c.b16 %v648, %v647
  %v857 = vpack.c.b16 %v650, %v649
  %v858 = vpack.c.b16 %v652, %v651
  %v859 = vpack.c.b16 %v654, %v653
  %v860 = vpack.c.b16 %v656, %v655
  %v861 = vpack.c.b16 %v658, %v657
  %v862 = vpack.c.b16 %v660, %v659
  %v863 = vpack.c.b16 %v662, %v661
  %v864 = vpack.c.b16 %v664, %v663
  %v865 = vpack.c.b16 %v666, %v665
  %v866 = vpack.c.b16 %v668, %v667
  %v867 = vpack.c.b16 %v670, %v669
  %v868 = vpack.c.b16 %v672, %v671
  %v869 = vpack.c.b16 %v674, %v673
  %v870 = vpack.c.b16 %v676, %v675
  %v871 = vpack.c.b16 %v678, %v677
  %v872 = vpack.c.b16 %v680, %v679
  %v873 = vpack.c.b16 %v682, %v681
  %v874 = vpack.c.b16 %v684, %v683
  %v875 = vpack.c.b16 %v686, %v685
  %v876 = vpack.c.b16 %v688, %v687
  %v877 = vpack.c.b16 %v690, %v689
  %v878 = vpack.c.b16 %v692, %v691
  %v879 = vpack.c.b16 %v694, %v693
  %v880 = vpack.c.b16 %v696, %v695
  %v881 = vpack.c.b16 %v698, %v697
  %v882 = vpack.c.b16 %v700, %v699
  %v883 = vpack.c.b16 %v702, %v701
  %v884 = vpack.c.b16 %v704, %v703
  %v885 = vpack.c.b16 %v706, %v705
  %v886 = vpack.c.b16 %v708, %v707
  %v887 = vpack.c.b16 %v710, %v709
  %v888 = vpack.c.b16 %v712, %v711
  %v889 = vpack.c.b16 %v714, %v713
  %v890 = vpack.c.b16 %v716, %v715
  %v891 = vpack.c.b16 %v718, %v717
  %v892 = vpack.c.b16 %v720, %v719
  %v893 = vpack.c.b16 %v722, %v721
  %v894 = vpack.c.b16 %v724, %v723
  %v895 = vpack.c.b16 %v726, %v725
  %v896 = vpack.c.b16 %v728, %v727
  %v897 = vpack.c.b16 %v730, %v729
  %v898 = vpack.c.b16 %v732, %v731
  %v899 = vpack.c.b16 %v734, %v733
  %v900 = vpack.c.b16 %v736, %v735
  %v901 = vpack.c.b16 %v738, %v737
  %v902 = vpack.c.b16 %v740, %v739
  %v903 = vpack.c.b16 %v742, %v741
  %v904 = vpack.c.b16 %v744, %v743
  %v905 = vpack.c.b16 %v746, %v745
  %v906 = vpack.c.b16 %v748, %v747
  %v907 = vpack.c.b16 %v750, %v749
  %v908 = vpack.c.b16 %v752, %v751
  %v909 = vpack.c.b16 %v754, %v753
  %v910 = vpack.c.b16 %v756, %v755
  %v911 = vpack.c.b16 %v758, %v757
  %v912 = vpack.c.b16 %v760, %v759
  %v913 = vpack.c.b16 %v762, %v761
  %v914 = vpack.c.b16 %v764, %v763
  %v915 = vpack.c.b16 %v766, %v765
  %v916 = vpack.c.b16 %v768, %v767
  %v917 = vpack.c.b16 %v770, %v769
  %v918 = vpack.c.b16 %v772, %v771
  %v919 = vpack.c.b16 %v774, %v773
  %v920 = vpack.c.b16 %v776, %v775
  %v921 = vpack.c.b16 %v778, %v777
  %v922 = vpack.c.b16 %v780, %v779
  %v923 = vpack.c.b16 %v782, %v781
  %v924 = vpack.c.b16 %v784, %v783
  %v925 = vpack.c.b16 %v786, %v785
  %v926 = vpack.c.b16 %v788, %v787
  %v927 = vpack.c.b16 %v790, %v789
  %v928 = vpack.c.b16 %v792, %v791
  %v929 = vpack.c.b16 %v794, %v793
  %v930 = vpack.c.b16 %v796, %v795
  %v931 = vpack.c.b16 %v798, %v797
  %v932 = vpack.c.b16 %v800, %v799
  %v933 = vpack.c.b16 %v802, %v801
  %v934 = vpack.c.b16 %v804, %v803
  %v935 = vpack.c.b16 %v806, %v805
  %v936 = vpack.c.b16 %v808, %v807
  %v945 = vunpack.c.l.b16 %v289
  %v946 = vunpack.c.l.b16 %v290
  %v947 = vunpack.c.l.b16 %v291
  %v948 = vunpack.c.l.b16 %v292
  %v949 = vunpack.c.l.b16 %v293
  %v950 = vunpack.c.l.b16 %v294
  %v951 = vunpack.c.l.b16 %v295
  %v952 = vunpack.c.l.b16 %v296
  %v953 = vpack.c.b16 %v946, %v945
  %v954 = vpack.c.b16 %v948, %v947
  %v955 = vpack.c.b16 %v950, %v949
  %v956 = vpack.c.b16 %v952, %v951
  %vm961 = vcmask 523264
  %v963 = vsel %vm961, %v809, 0
  %v966 = vsel %vm961, %v810, 0
  %v969 = vsel %vm961, %v811, 0
  %v972 = vsel %vm961, %v812, 0
  %v975 = vsel %vm961, %v813, 0
  %v978 = vsel %vm961, %v814, 0
  %v981 = vsel %vm961, %v815, 0
  %v984 = vsel %vm961, %v816, 0
  %v987 = vsel %vm961, %v817, 0
  %v990 = vsel %vm961, %v818, 0
  %v993 = vsel %vm961, %v819, 0
  %v996 = vsel %vm961, %v820, 0
  %v999 = vsel %vm961, %v821, 0
  %v1002 = vsel %vm961, %v822, 0
  %v1005 = vsel %vm961, %v823, 0
  %v1008 = vsel %vm961, %v824, 0
  %v1011 = vsel %vm961, %v825, 0
  %v1014 = vsel %vm961, %v826, 0
  %v1017 = vsel %vm961, %v827, 0
  %v1020 = vsel %vm961, %v828, 0
  %v1023 = vsel %vm961, %v829, 0
  %v1026 = vsel %vm961, %v830, 0
  %v1029 = vsel %vm961, %v831, 0
  %v1032 = vsel %vm961, %v832, 0
  %v1035 = vsel %vm961, %v833, 0
  %v1038 = vsel %vm961, %v834, 0
  %v1041 = vsel %vm961, %v835, 0
  %v1044 = vsel %vm961, %v836, 0
  %v1047 = vsel %vm961, %v837, 0
  %v1050 = vsel %vm961, %v838, 0
  %v1053 = vsel %vm961, %v839, 0
  %v1056 = vsel %vm961, %v840, 0
  %v1059 = vsel %vm961, %v841, 0
  %v1062 = vsel %vm961, %v842, 0
  %v1065 = vsel %vm961, %v843, 0
  %v1068 = vsel %vm961, %v844, 0
  %v1071 = vsel %vm961, %v845, 0
  %v1074 = vsel %vm961, %v846, 0
  %v1077 = vsel %vm961, %v847, 0
  %v1080 = vsel %vm961, %v848, 0
  %v1083 = vsel %vm961, %v849, 0
  %v1086 = vsel %vm961, %v850, 0
  %v1089 = vsel %vm961, %v851, 0
  %v1092 = vsel %vm961, %v852, 0
  %v1095 = vsel %vm961, %v853, 0
  %v1098 = vsel %vm961, %v854, 0
  %v1101 = vsel %vm961, %v855, 0
  %v1104 = vsel %vm961, %v856, 0
  %v1107 = vsel %vm961, %v857, 0
  %v1110 = vsel %vm961, %v858, 0
  %v1113 = vsel %vm961, %v859, 0
  %v1116 = vsel %vm961, %v860, 0
  %v1119 = vsel %vm961, %v861, 0
  %v1122 = vsel %vm961, %v862, 0
  %v1125 = vsel %vm961, %v863, 0
  %v1128 = vsel %vm961, %v864, 0
  %v1131 = vsel %vm961, %v865, 0
  %v1134 = vsel %vm961, %v866, 0
  %v1137 = vsel %vm961, %v867, 0
  %v1140 = vsel %vm961, %v868, 0
  %v1143 = vsel %vm961, %v869, 0
  %v1146 = vsel %vm961, %v870, 0
  %v1149 = vsel %vm961, %v871, 0
  %v1152 = vsel %vm961, %v872, 0
  %v1155 = vsel %vm961, %v873, 0
  %v1158 = vsel %vm961, %v874, 0
  %v1161 = vsel %vm961, %v875, 0
  %v1164 = vsel %vm961, %v876, 0
  %v1167 = vsel %vm961, %v877, 0
  %v1170 = vsel %vm961, %v878, 0
  %v1173 = vsel %vm961, %v879, 0
  %v1176 = vsel %vm961, %v880, 0
  %v1179 = vsel %vm961, %v881, 0
  %v1182 = vsel %vm961, %v882, 0
  %v1185 = vsel %vm961, %v883, 0
  %v1188 = vsel %vm961, %v884, 0
  %v1191 = vsel %vm961, %v885, 0
  %v1194 = vsel %vm961, %v886, 0
  %v1197 = vsel %vm961, %v887, 0
  %v1200 = vsel %vm961, %v888, 0
  %v1203 = vsel %vm961, %v889, 0
  %v1206 = vsel %vm961, %v890, 0
  %v1209 = vsel %vm961, %v891, 0
  %v1212 = vsel %vm961, %v892, 0
  %v1215 = vsel %vm961, %v893, 0
  %v1218 = vsel %vm961, %v894, 0
  %v1221 = vsel %vm961, %v895, 0
  %v1224 = vsel %vm961, %v896, 0
  %v1227 = vsel %vm961, %v897, 0
  %v1230 = vsel %vm961, %v898, 0
  %v1233 = vsel %vm961, %v899, 0
  %v1236 = vsel %vm961, %v900, 0
  %v1239 = vsel %vm961, %v901, 0
  %v1242 = vsel %vm961, %v902, 0
  %v1245 = vsel %vm961, %v903, 0
  %v1248 = vsel %vm961, %v904, 0
  %v1251 = vsel %vm961, %v905, 0
  %v1254 = vsel %vm961, %v906, 0
  %v1257 = vsel %vm961, %v907, 0
  %v1260 = vsel %vm961, %v908, 0
  %v1263 = vsel %vm961, %v909, 0
  %v1266 = vsel %vm961, %v910, 0
  %v1269 = vsel %vm961, %v911, 0
  %v1272 = vsel %vm961, %v912, 0
  %v1275 = vsel %vm961, %v913, 0
  %v1278 = vsel %vm961, %v914, 0
  %v1281 = vsel %vm961, %v915, 0
  %v1284 = vsel %vm961, %v916, 0
  %v1287 = vsel %vm961, %v917, 0
  %v1290 = vsel %vm961, %v918, 0
  %v1293 = vsel %vm961, %v919, 0
  %v1296 = vsel %vm961, %v920, 0
  %v1299 = vsel %vm961, %v921, 0
  %v1302 = vsel %vm961, %v922, 0
  %v1305 = vsel %vm961, %v923, 0
  %v1308 = vsel %vm961, %v924, 0
  %v1311 = vsel %vm961, %v925, 0
  %v1314 = vsel %vm961, %v926, 0
  %v1317 = vsel %vm961, %v927, 0
  %v1320 = vsel %vm961, %v928, 0
  %v1323 = vsel %vm961, %v929, 0
  %v1326 = vsel %vm961, %v930, 0
  %v1329 = vsel %vm961, %v931, 0
  %v1332 = vsel %vm961, %v932, 0
  %v1335 = vsel %vm961, %v933, 0
  %v1338 = vsel %vm961, %v934, 0
  %v1341 = vsel %vm961, %v935, 0
  %v1344 = vsel %vm961, %v936, 0
  %1346 = vmatpush.bf16.msra.mxu0 0
  %1347 = vmatpush.bf16.msra.mxu0 0
  %1348 = vmatpush.bf16.msra.mxu0 0
  %1349 = vmatpush.bf16.msra.mxu0 0
  %1350 = vmatpush.bf16.msra.mxu0 %v956
  %1351 = vmatpush.bf16.msra.mxu0 %v955
  %1352 = vmatpush.bf16.msra.mxu0 %v954
  %1353 = vmatpush.bf16.msra.mxu0 %v953
  %1354 = vmatmul.bf16.gmra.mxu0 %v963
  %v1355 = vpop.f32.mrf.mxu0
  %v1356 = vadd.f32 0.0, %v1355
  %v1357 = vpop.f32.mrf.mxu0
  %v1358 = vadd.f32 0.0, %v1357
  %1359 = vmatmul.bf16.gmra.mxu0 %v966
  %v1360 = vpop.f32.mrf.mxu0
  %v1361 = vadd.f32 0.0, %v1360
  %v1362 = vpop.f32.mrf.mxu0
  %v1363 = vadd.f32 0.0, %v1362
  %1364 = vmatmul.bf16.gmra.mxu0 %v969
  %v1365 = vpop.f32.mrf.mxu0
  %v1366 = vadd.f32 0.0, %v1365
  %v1367 = vpop.f32.mrf.mxu0
  %v1368 = vadd.f32 0.0, %v1367
  %1369 = vmatmul.bf16.gmra.mxu0 %v972
  %v1370 = vpop.f32.mrf.mxu0
  %v1371 = vadd.f32 0.0, %v1370
  %v1372 = vpop.f32.mrf.mxu0
  %v1373 = vadd.f32 0.0, %v1372
  %1374 = vmatmul.bf16.gmra.mxu0 %v975
  %v1375 = vpop.f32.mrf.mxu0
  %v1376 = vadd.f32 0.0, %v1375
  %v1377 = vpop.f32.mrf.mxu0
  %v1378 = vadd.f32 0.0, %v1377
  %1379 = vmatmul.bf16.gmra.mxu0 %v978
  %v1380 = vpop.f32.mrf.mxu0
  %v1381 = vadd.f32 0.0, %v1380
  %v1382 = vpop.f32.mrf.mxu0
  %v1383 = vadd.f32 0.0, %v1382
  %1384 = vmatmul.bf16.gmra.mxu0 %v981
  %v1385 = vpop.f32.mrf.mxu0
  %v1386 = vadd.f32 0.0, %v1385
  %v1387 = vpop.f32.mrf.mxu0
  %v1388 = vadd.f32 0.0, %v1387
  %1389 = vmatmul.bf16.gmra.mxu0 %v984
  %v1390 = vpop.f32.mrf.mxu0
  %v1391 = vadd.f32 0.0, %v1390
  %v1392 = vpop.f32.mrf.mxu0
  %v1393 = vadd.f32 0.0, %v1392
  %1394 = vmatmul.bf16.gmra.mxu0 %v987
  %v1395 = vpop.f32.mrf.mxu0
  %v1396 = vadd.f32 0.0, %v1395
  %v1397 = vpop.f32.mrf.mxu0
  %v1398 = vadd.f32 0.0, %v1397
  %1399 = vmatmul.bf16.gmra.mxu0 %v990
  %v1400 = vpop.f32.mrf.mxu0
  %v1401 = vadd.f32 0.0, %v1400
  %v1402 = vpop.f32.mrf.mxu0
  %v1403 = vadd.f32 0.0, %v1402
  %1404 = vmatmul.bf16.gmra.mxu0 %v993
  %v1405 = vpop.f32.mrf.mxu0
  %v1406 = vadd.f32 0.0, %v1405
  %v1407 = vpop.f32.mrf.mxu0
  %v1408 = vadd.f32 0.0, %v1407
  %1409 = vmatmul.bf16.gmra.mxu0 %v996
  %v1410 = vpop.f32.mrf.mxu0
  %v1411 = vadd.f32 0.0, %v1410
  %v1412 = vpop.f32.mrf.mxu0
  %v1413 = vadd.f32 0.0, %v1412
  %1414 = vmatmul.bf16.gmra.mxu0 %v999
  %v1415 = vpop.f32.mrf.mxu0
  %v1416 = vadd.f32 0.0, %v1415
  %v1417 = vpop.f32.mrf.mxu0
  %v1418 = vadd.f32 0.0, %v1417
  %1419 = vmatmul.bf16.gmra.mxu0 %v1002
  %v1420 = vpop.f32.mrf.mxu0
  %v1421 = vadd.f32 0.0, %v1420
  %v1422 = vpop.f32.mrf.mxu0
  %v1423 = vadd.f32 0.0, %v1422
  %1424 = vmatmul.bf16.gmra.mxu0 %v1005
  %v1425 = vpop.f32.mrf.mxu0
  %v1426 = vadd.f32 0.0, %v1425
  %v1427 = vpop.f32.mrf.mxu0
  %v1428 = vadd.f32 0.0, %v1427
  %1429 = vmatmul.bf16.gmra.mxu0 %v1008
  %v1430 = vpop.f32.mrf.mxu0
  %v1431 = vadd.f32 0.0, %v1430
  %v1432 = vpop.f32.mrf.mxu0
  %v1433 = vadd.f32 0.0, %v1432
  %1434 = vmatmul.bf16.gmra.mxu0 %v1011
  %v1435 = vpop.f32.mrf.mxu0
  %v1436 = vadd.f32 0.0, %v1435
  %v1437 = vpop.f32.mrf.mxu0
  %v1438 = vadd.f32 0.0, %v1437
  %1439 = vmatmul.bf16.gmra.mxu0 %v1014
  %v1440 = vpop.f32.mrf.mxu0
  %v1441 = vadd.f32 0.0, %v1440
  %v1442 = vpop.f32.mrf.mxu0
  %v1443 = vadd.f32 0.0, %v1442
  %1444 = vmatmul.bf16.gmra.mxu0 %v1017
  %v1445 = vpop.f32.mrf.mxu0
  %v1446 = vadd.f32 0.0, %v1445
  %v1447 = vpop.f32.mrf.mxu0
  %v1448 = vadd.f32 0.0, %v1447
  %1449 = vmatmul.bf16.gmra.mxu0 %v1020
  %v1450 = vpop.f32.mrf.mxu0
  %v1451 = vadd.f32 0.0, %v1450
  %v1452 = vpop.f32.mrf.mxu0
  %v1453 = vadd.f32 0.0, %v1452
  %1454 = vmatmul.bf16.gmra.mxu0 %v1023
  %v1455 = vpop.f32.mrf.mxu0
  %v1456 = vadd.f32 0.0, %v1455
  %v1457 = vpop.f32.mrf.mxu0
  %v1458 = vadd.f32 0.0, %v1457
  %1459 = vmatmul.bf16.gmra.mxu0 %v1026
  %v1460 = vpop.f32.mrf.mxu0
  %v1461 = vadd.f32 0.0, %v1460
  %v1462 = vpop.f32.mrf.mxu0
  %v1463 = vadd.f32 0.0, %v1462
  %1464 = vmatmul.bf16.gmra.mxu0 %v1029
  %v1465 = vpop.f32.mrf.mxu0
  %v1466 = vadd.f32 0.0, %v1465
  %v1467 = vpop.f32.mrf.mxu0
  %v1468 = vadd.f32 0.0, %v1467
  %1469 = vmatmul.bf16.gmra.mxu0 %v1032
  %v1470 = vpop.f32.mrf.mxu0
  %v1471 = vadd.f32 0.0, %v1470
  %v1472 = vpop.f32.mrf.mxu0
  %v1473 = vadd.f32 0.0, %v1472
  %1474 = vmatmul.bf16.gmra.mxu0 %v1035
  %v1475 = vpop.f32.mrf.mxu0
  %v1476 = vadd.f32 0.0, %v1475
  %v1477 = vpop.f32.mrf.mxu0
  %v1478 = vadd.f32 0.0, %v1477
  %1479 = vmatmul.bf16.gmra.mxu0 %v1038
  %v1480 = vpop.f32.mrf.mxu0
  %v1481 = vadd.f32 0.0, %v1480
  %v1482 = vpop.f32.mrf.mxu0
  %v1483 = vadd.f32 0.0, %v1482
  %1484 = vmatmul.bf16.gmra.mxu0 %v1041
  %v1485 = vpop.f32.mrf.mxu0
  %v1486 = vadd.f32 0.0, %v1485
  %v1487 = vpop.f32.mrf.mxu0
  %v1488 = vadd.f32 0.0, %v1487
  %1489 = vmatmul.bf16.gmra.mxu0 %v1044
  %v1490 = vpop.f32.mrf.mxu0
  %v1491 = vadd.f32 0.0, %v1490
  %v1492 = vpop.f32.mrf.mxu0
  %v1493 = vadd.f32 0.0, %v1492
  %1494 = vmatmul.bf16.gmra.mxu0 %v1047
  %v1495 = vpop.f32.mrf.mxu0
  %v1496 = vadd.f32 0.0, %v1495
  %v1497 = vpop.f32.mrf.mxu0
  %v1498 = vadd.f32 0.0, %v1497
  %1499 = vmatmul.bf16.gmra.mxu0 %v1050
  %v1500 = vpop.f32.mrf.mxu0
  %v1501 = vadd.f32 0.0, %v1500
  %v1502 = vpop.f32.mrf.mxu0
  %v1503 = vadd.f32 0.0, %v1502
  %1504 = vmatmul.bf16.gmra.mxu0 %v1053
  %v1505 = vpop.f32.mrf.mxu0
  %v1506 = vadd.f32 0.0, %v1505
  %v1507 = vpop.f32.mrf.mxu0
  %v1508 = vadd.f32 0.0, %v1507
  %1509 = vmatmul.bf16.gmra.mxu0 %v1056
  %v1510 = vpop.f32.mrf.mxu0
  %v1511 = vadd.f32 0.0, %v1510
  %v1512 = vpop.f32.mrf.mxu0
  %v1513 = vadd.f32 0.0, %v1512
  %1514 = vmatmul.bf16.gmra.mxu0 %v1059
  %v1515 = vpop.f32.mrf.mxu0
  %v1516 = vadd.f32 0.0, %v1515
  %v1517 = vpop.f32.mrf.mxu0
  %v1518 = vadd.f32 0.0, %v1517
  %1519 = vmatmul.bf16.gmra.mxu0 %v1062
  %v1520 = vpop.f32.mrf.mxu0
  %v1521 = vadd.f32 0.0, %v1520
  %v1522 = vpop.f32.mrf.mxu0
  %v1523 = vadd.f32 0.0, %v1522
  %1524 = vmatmul.bf16.gmra.mxu0 %v1065
  %v1525 = vpop.f32.mrf.mxu0
  %v1526 = vadd.f32 0.0, %v1525
  %v1527 = vpop.f32.mrf.mxu0
  %v1528 = vadd.f32 0.0, %v1527
  %1529 = vmatmul.bf16.gmra.mxu0 %v1068
  %v1530 = vpop.f32.mrf.mxu0
  %v1531 = vadd.f32 0.0, %v1530
  %v1532 = vpop.f32.mrf.mxu0
  %v1533 = vadd.f32 0.0, %v1532
  %1534 = vmatmul.bf16.gmra.mxu0 %v1071
  %v1535 = vpop.f32.mrf.mxu0
  %v1536 = vadd.f32 0.0, %v1535
  %v1537 = vpop.f32.mrf.mxu0
  %v1538 = vadd.f32 0.0, %v1537
  %1539 = vmatmul.bf16.gmra.mxu0 %v1074
  %v1540 = vpop.f32.mrf.mxu0
  %v1541 = vadd.f32 0.0, %v1540
  %v1542 = vpop.f32.mrf.mxu0
  %v1543 = vadd.f32 0.0, %v1542
  %1544 = vmatmul.bf16.gmra.mxu0 %v1077
  %v1545 = vpop.f32.mrf.mxu0
  %v1546 = vadd.f32 0.0, %v1545
  %v1547 = vpop.f32.mrf.mxu0
  %v1548 = vadd.f32 0.0, %v1547
  %1549 = vmatmul.bf16.gmra.mxu0 %v1080
  %v1550 = vpop.f32.mrf.mxu0
  %v1551 = vadd.f32 0.0, %v1550
  %v1552 = vpop.f32.mrf.mxu0
  %v1553 = vadd.f32 0.0, %v1552
  %1554 = vmatmul.bf16.gmra.mxu0 %v1083
  %v1555 = vpop.f32.mrf.mxu0
  %v1556 = vadd.f32 0.0, %v1555
  %v1557 = vpop.f32.mrf.mxu0
  %v1558 = vadd.f32 0.0, %v1557
  %1559 = vmatmul.bf16.gmra.mxu0 %v1086
  %v1560 = vpop.f32.mrf.mxu0
  %v1561 = vadd.f32 0.0, %v1560
  %v1562 = vpop.f32.mrf.mxu0
  %v1563 = vadd.f32 0.0, %v1562
  %1564 = vmatmul.bf16.gmra.mxu0 %v1089
  %v1565 = vpop.f32.mrf.mxu0
  %v1566 = vadd.f32 0.0, %v1565
  %v1567 = vpop.f32.mrf.mxu0
  %v1568 = vadd.f32 0.0, %v1567
  %1569 = vmatmul.bf16.gmra.mxu0 %v1092
  %v1570 = vpop.f32.mrf.mxu0
  %v1571 = vadd.f32 0.0, %v1570
  %v1572 = vpop.f32.mrf.mxu0
  %v1573 = vadd.f32 0.0, %v1572
  %1574 = vmatmul.bf16.gmra.mxu0 %v1095
  %v1575 = vpop.f32.mrf.mxu0
  %v1576 = vadd.f32 0.0, %v1575
  %v1577 = vpop.f32.mrf.mxu0
  %v1578 = vadd.f32 0.0, %v1577
  %1579 = vmatmul.bf16.gmra.mxu0 %v1098
  %v1580 = vpop.f32.mrf.mxu0
  %v1581 = vadd.f32 0.0, %v1580
  %v1582 = vpop.f32.mrf.mxu0
  %v1583 = vadd.f32 0.0, %v1582
  %1584 = vmatmul.bf16.gmra.mxu0 %v1101
  %v1585 = vpop.f32.mrf.mxu0
  %v1586 = vadd.f32 0.0, %v1585
  %v1587 = vpop.f32.mrf.mxu0
  %v1588 = vadd.f32 0.0, %v1587
  %1589 = vmatmul.bf16.gmra.mxu0 %v1104
  %v1590 = vpop.f32.mrf.mxu0
  %v1591 = vadd.f32 0.0, %v1590
  %v1592 = vpop.f32.mrf.mxu0
  %v1593 = vadd.f32 0.0, %v1592
  %1594 = vmatmul.bf16.gmra.mxu0 %v1107
  %v1595 = vpop.f32.mrf.mxu0
  %v1596 = vadd.f32 0.0, %v1595
  %v1597 = vpop.f32.mrf.mxu0
  %v1598 = vadd.f32 0.0, %v1597
  %1599 = vmatmul.bf16.gmra.mxu0 %v1110
  %v1600 = vpop.f32.mrf.mxu0
  %v1601 = vadd.f32 0.0, %v1600
  %v1602 = vpop.f32.mrf.mxu0
  %v1603 = vadd.f32 0.0, %v1602
  %1604 = vmatmul.bf16.gmra.mxu0 %v1113
  %v1605 = vpop.f32.mrf.mxu0
  %v1606 = vadd.f32 0.0, %v1605
  %v1607 = vpop.f32.mrf.mxu0
  %v1608 = vadd.f32 0.0, %v1607
  %1609 = vmatmul.bf16.gmra.mxu0 %v1116
  %v1610 = vpop.f32.mrf.mxu0
  %v1611 = vadd.f32 0.0, %v1610
  %v1612 = vpop.f32.mrf.mxu0
  %v1613 = vadd.f32 0.0, %v1612
  %1614 = vmatmul.bf16.gmra.mxu0 %v1119
  %v1615 = vpop.f32.mrf.mxu0
  %v1616 = vadd.f32 0.0, %v1615
  %v1617 = vpop.f32.mrf.mxu0
  %v1618 = vadd.f32 0.0, %v1617
  %1619 = vmatmul.bf16.gmra.mxu0 %v1122
  %v1620 = vpop.f32.mrf.mxu0
  %v1621 = vadd.f32 0.0, %v1620
  %v1622 = vpop.f32.mrf.mxu0
  %v1623 = vadd.f32 0.0, %v1622
  %1624 = vmatmul.bf16.gmra.mxu0 %v1125
  %v1625 = vpop.f32.mrf.mxu0
  %v1626 = vadd.f32 0.0, %v1625
  %v1627 = vpop.f32.mrf.mxu0
  %v1628 = vadd.f32 0.0, %v1627
  %1629 = vmatmul.bf16.gmra.mxu0 %v1128
  %v1630 = vpop.f32.mrf.mxu0
  %v1631 = vadd.f32 0.0, %v1630
  %v1632 = vpop.f32.mrf.mxu0
  %v1633 = vadd.f32 0.0, %v1632
  %1634 = vmatmul.bf16.gmra.mxu0 %v1131
  %v1635 = vpop.f32.mrf.mxu0
  %v1636 = vadd.f32 0.0, %v1635
  %v1637 = vpop.f32.mrf.mxu0
  %v1638 = vadd.f32 0.0, %v1637
  %1639 = vmatmul.bf16.gmra.mxu0 %v1134
  %v1640 = vpop.f32.mrf.mxu0
  %v1641 = vadd.f32 0.0, %v1640
  %v1642 = vpop.f32.mrf.mxu0
  %v1643 = vadd.f32 0.0, %v1642
  %1644 = vmatmul.bf16.gmra.mxu0 %v1137
  %v1645 = vpop.f32.mrf.mxu0
  %v1646 = vadd.f32 0.0, %v1645
  %v1647 = vpop.f32.mrf.mxu0
  %v1648 = vadd.f32 0.0, %v1647
  %1649 = vmatmul.bf16.gmra.mxu0 %v1140
  %v1650 = vpop.f32.mrf.mxu0
  %v1651 = vadd.f32 0.0, %v1650
  %v1652 = vpop.f32.mrf.mxu0
  %v1653 = vadd.f32 0.0, %v1652
  %1654 = vmatmul.bf16.gmra.mxu0 %v1143
  %v1655 = vpop.f32.mrf.mxu0
  %v1656 = vadd.f32 0.0, %v1655
  %v1657 = vpop.f32.mrf.mxu0
  %v1658 = vadd.f32 0.0, %v1657
  %1659 = vmatmul.bf16.gmra.mxu0 %v1146
  %v1660 = vpop.f32.mrf.mxu0
  %v1661 = vadd.f32 0.0, %v1660
  %v1662 = vpop.f32.mrf.mxu0
  %v1663 = vadd.f32 0.0, %v1662
  %1664 = vmatmul.bf16.gmra.mxu0 %v1149
  %v1665 = vpop.f32.mrf.mxu0
  %v1666 = vadd.f32 0.0, %v1665
  %v1667 = vpop.f32.mrf.mxu0
  %v1668 = vadd.f32 0.0, %v1667
  %1669 = vmatmul.bf16.gmra.mxu0 %v1152
  %v1670 = vpop.f32.mrf.mxu0
  %v1671 = vadd.f32 0.0, %v1670
  %v1672 = vpop.f32.mrf.mxu0
  %v1673 = vadd.f32 0.0, %v1672
  %1674 = vmatmul.bf16.gmra.mxu0 %v1155
  %v1675 = vpop.f32.mrf.mxu0
  %v1676 = vadd.f32 0.0, %v1675
  %v1677 = vpop.f32.mrf.mxu0
  %v1678 = vadd.f32 0.0, %v1677
  %1679 = vmatmul.bf16.gmra.mxu0 %v1158
  %v1680 = vpop.f32.mrf.mxu0
  %v1681 = vadd.f32 0.0, %v1680
  %v1682 = vpop.f32.mrf.mxu0
  %v1683 = vadd.f32 0.0, %v1682
  %1684 = vmatmul.bf16.gmra.mxu0 %v1161
  %v1685 = vpop.f32.mrf.mxu0
  %v1686 = vadd.f32 0.0, %v1685
  %v1687 = vpop.f32.mrf.mxu0
  %v1688 = vadd.f32 0.0, %v1687
  %1689 = vmatmul.bf16.gmra.mxu0 %v1164
  %v1690 = vpop.f32.mrf.mxu0
  %v1691 = vadd.f32 0.0, %v1690
  %v1692 = vpop.f32.mrf.mxu0
  %v1693 = vadd.f32 0.0, %v1692
  %1694 = vmatmul.bf16.gmra.mxu0 %v1167
  %v1695 = vpop.f32.mrf.mxu0
  %v1696 = vadd.f32 0.0, %v1695
  %v1697 = vpop.f32.mrf.mxu0
  %v1698 = vadd.f32 0.0, %v1697
  %1699 = vmatmul.bf16.gmra.mxu0 %v1170
  %v1700 = vpop.f32.mrf.mxu0
  %v1701 = vadd.f32 0.0, %v1700
  %v1702 = vpop.f32.mrf.mxu0
  %v1703 = vadd.f32 0.0, %v1702
  %1704 = vmatmul.bf16.gmra.mxu0 %v1173
  %v1705 = vpop.f32.mrf.mxu0
  %v1706 = vadd.f32 0.0, %v1705
  %v1707 = vpop.f32.mrf.mxu0
  %v1708 = vadd.f32 0.0, %v1707
  %1709 = vmatmul.bf16.gmra.mxu0 %v1176
  %v1710 = vpop.f32.mrf.mxu0
  %v1711 = vadd.f32 0.0, %v1710
  %v1712 = vpop.f32.mrf.mxu0
  %v1713 = vadd.f32 0.0, %v1712
  %1714 = vmatmul.bf16.gmra.mxu0 %v1179
  %v1715 = vpop.f32.mrf.mxu0
  %v1716 = vadd.f32 0.0, %v1715
  %v1717 = vpop.f32.mrf.mxu0
  %v1718 = vadd.f32 0.0, %v1717
  %1719 = vmatmul.bf16.gmra.mxu0 %v1182
  %v1720 = vpop.f32.mrf.mxu0
  %v1721 = vadd.f32 0.0, %v1720
  %v1722 = vpop.f32.mrf.mxu0
  %v1723 = vadd.f32 0.0, %v1722
  %1724 = vmatmul.bf16.gmra.mxu0 %v1185
  %v1725 = vpop.f32.mrf.mxu0
  %v1726 = vadd.f32 0.0, %v1725
  %v1727 = vpop.f32.mrf.mxu0
  %v1728 = vadd.f32 0.0, %v1727
  %1729 = vmatmul.bf16.gmra.mxu0 %v1188
  %v1730 = vpop.f32.mrf.mxu0
  %v1731 = vadd.f32 0.0, %v1730
  %v1732 = vpop.f32.mrf.mxu0
  %v1733 = vadd.f32 0.0, %v1732
  %1734 = vmatmul.bf16.gmra.mxu0 %v1191
  %v1735 = vpop.f32.mrf.mxu0
  %v1736 = vadd.f32 0.0, %v1735
  %v1737 = vpop.f32.mrf.mxu0
  %v1738 = vadd.f32 0.0, %v1737
  %1739 = vmatmul.bf16.gmra.mxu0 %v1194
  %v1740 = vpop.f32.mrf.mxu0
  %v1741 = vadd.f32 0.0, %v1740
  %v1742 = vpop.f32.mrf.mxu0
  %v1743 = vadd.f32 0.0, %v1742
  %1744 = vmatmul.bf16.gmra.mxu0 %v1197
  %v1745 = vpop.f32.mrf.mxu0
  %v1746 = vadd.f32 0.0, %v1745
  %v1747 = vpop.f32.mrf.mxu0
  %v1748 = vadd.f32 0.0, %v1747
  %1749 = vmatmul.bf16.gmra.mxu0 %v1200
  %v1750 = vpop.f32.mrf.mxu0
  %v1751 = vadd.f32 0.0, %v1750
  %v1752 = vpop.f32.mrf.mxu0
  %v1753 = vadd.f32 0.0, %v1752
  %1754 = vmatmul.bf16.gmra.mxu0 %v1203
  %v1755 = vpop.f32.mrf.mxu0
  %v1756 = vadd.f32 0.0, %v1755
  %v1757 = vpop.f32.mrf.mxu0
  %v1758 = vadd.f32 0.0, %v1757
  %1759 = vmatmul.bf16.gmra.mxu0 %v1206
  %v1760 = vpop.f32.mrf.mxu0
  %v1761 = vadd.f32 0.0, %v1760
  %v1762 = vpop.f32.mrf.mxu0
  %v1763 = vadd.f32 0.0, %v1762
  %1764 = vmatmul.bf16.gmra.mxu0 %v1209
  %v1765 = vpop.f32.mrf.mxu0
  %v1766 = vadd.f32 0.0, %v1765
  %v1767 = vpop.f32.mrf.mxu0
  %v1768 = vadd.f32 0.0, %v1767
  %1769 = vmatmul.bf16.gmra.mxu0 %v1212
  %v1770 = vpop.f32.mrf.mxu0
  %v1771 = vadd.f32 0.0, %v1770
  %v1772 = vpop.f32.mrf.mxu0
  %v1773 = vadd.f32 0.0, %v1772
  %1774 = vmatmul.bf16.gmra.mxu0 %v1215
  %v1775 = vpop.f32.mrf.mxu0
  %v1776 = vadd.f32 0.0, %v1775
  %v1777 = vpop.f32.mrf.mxu0
  %v1778 = vadd.f32 0.0, %v1777
  %1779 = vmatmul.bf16.gmra.mxu0 %v1218
  %v1780 = vpop.f32.mrf.mxu0
  %v1781 = vadd.f32 0.0, %v1780
  %v1782 = vpop.f32.mrf.mxu0
  %v1783 = vadd.f32 0.0, %v1782
  %1784 = vmatmul.bf16.gmra.mxu0 %v1221
  %v1785 = vpop.f32.mrf.mxu0
  %v1786 = vadd.f32 0.0, %v1785
  %v1787 = vpop.f32.mrf.mxu0
  %v1788 = vadd.f32 0.0, %v1787
  %1789 = vmatmul.bf16.gmra.mxu0 %v1224
  %v1790 = vpop.f32.mrf.mxu0
  %v1791 = vadd.f32 0.0, %v1790
  %v1792 = vpop.f32.mrf.mxu0
  %v1793 = vadd.f32 0.0, %v1792
  %1794 = vmatmul.bf16.gmra.mxu0 %v1227
  %v1795 = vpop.f32.mrf.mxu0
  %v1796 = vadd.f32 0.0, %v1795
  %v1797 = vpop.f32.mrf.mxu0
  %v1798 = vadd.f32 0.0, %v1797
  %1799 = vmatmul.bf16.gmra.mxu0 %v1230
  %v1800 = vpop.f32.mrf.mxu0
  %v1801 = vadd.f32 0.0, %v1800
  %v1802 = vpop.f32.mrf.mxu0
  %v1803 = vadd.f32 0.0, %v1802
  %1804 = vmatmul.bf16.gmra.mxu0 %v1233
  %v1805 = vpop.f32.mrf.mxu0
  %v1806 = vadd.f32 0.0, %v1805
  %v1807 = vpop.f32.mrf.mxu0
  %v1808 = vadd.f32 0.0, %v1807
  %1809 = vmatmul.bf16.gmra.mxu0 %v1236
  %v1810 = vpop.f32.mrf.mxu0
  %v1811 = vadd.f32 0.0, %v1810
  %v1812 = vpop.f32.mrf.mxu0
  %v1813 = vadd.f32 0.0, %v1812
  %1814 = vmatmul.bf16.gmra.mxu0 %v1239
  %v1815 = vpop.f32.mrf.mxu0
  %v1816 = vadd.f32 0.0, %v1815
  %v1817 = vpop.f32.mrf.mxu0
  %v1818 = vadd.f32 0.0, %v1817
  %1819 = vmatmul.bf16.gmra.mxu0 %v1242
  %v1820 = vpop.f32.mrf.mxu0
  %v1821 = vadd.f32 0.0, %v1820
  %v1822 = vpop.f32.mrf.mxu0
  %v1823 = vadd.f32 0.0, %v1822
  %1824 = vmatmul.bf16.gmra.mxu0 %v1245
  %v1825 = vpop.f32.mrf.mxu0
  %v1826 = vadd.f32 0.0, %v1825
  %v1827 = vpop.f32.mrf.mxu0
  %v1828 = vadd.f32 0.0, %v1827
  %1829 = vmatmul.bf16.gmra.mxu0 %v1248
  %v1830 = vpop.f32.mrf.mxu0
  %v1831 = vadd.f32 0.0, %v1830
  %v1832 = vpop.f32.mrf.mxu0
  %v1833 = vadd.f32 0.0, %v1832
  %1834 = vmatmul.bf16.gmra.mxu0 %v1251
  %v1835 = vpop.f32.mrf.mxu0
  %v1836 = vadd.f32 0.0, %v1835
  %v1837 = vpop.f32.mrf.mxu0
  %v1838 = vadd.f32 0.0, %v1837
  %1839 = vmatmul.bf16.gmra.mxu0 %v1254
  %v1840 = vpop.f32.mrf.mxu0
  %v1841 = vadd.f32 0.0, %v1840
  %v1842 = vpop.f32.mrf.mxu0
  %v1843 = vadd.f32 0.0, %v1842
  %1844 = vmatmul.bf16.gmra.mxu0 %v1257
  %v1845 = vpop.f32.mrf.mxu0
  %v1846 = vadd.f32 0.0, %v1845
  %v1847 = vpop.f32.mrf.mxu0
  %v1848 = vadd.f32 0.0, %v1847
  %1849 = vmatmul.bf16.gmra.mxu0 %v1260
  %v1850 = vpop.f32.mrf.mxu0
  %v1851 = vadd.f32 0.0, %v1850
  %v1852 = vpop.f32.mrf.mxu0
  %v1853 = vadd.f32 0.0, %v1852
  %1854 = vmatmul.bf16.gmra.mxu0 %v1263
  %v1855 = vpop.f32.mrf.mxu0
  %v1856 = vadd.f32 0.0, %v1855
  %v1857 = vpop.f32.mrf.mxu0
  %v1858 = vadd.f32 0.0, %v1857
  %1859 = vmatmul.bf16.gmra.mxu0 %v1266
  %v1860 = vpop.f32.mrf.mxu0
  %v1861 = vadd.f32 0.0, %v1860
  %v1862 = vpop.f32.mrf.mxu0
  %v1863 = vadd.f32 0.0, %v1862
  %1864 = vmatmul.bf16.gmra.mxu0 %v1269
  %v1865 = vpop.f32.mrf.mxu0
  %v1866 = vadd.f32 0.0, %v1865
  %v1867 = vpop.f32.mrf.mxu0
  %v1868 = vadd.f32 0.0, %v1867
  %1869 = vmatmul.bf16.gmra.mxu0 %v1272
  %v1870 = vpop.f32.mrf.mxu0
  %v1871 = vadd.f32 0.0, %v1870
  %v1872 = vpop.f32.mrf.mxu0
  %v1873 = vadd.f32 0.0, %v1872
  %1874 = vmatmul.bf16.gmra.mxu0 %v1275
  %v1875 = vpop.f32.mrf.mxu0
  %v1876 = vadd.f32 0.0, %v1875
  %v1877 = vpop.f32.mrf.mxu0
  %v1878 = vadd.f32 0.0, %v1877
  %1879 = vmatmul.bf16.gmra.mxu0 %v1278
  %v1880 = vpop.f32.mrf.mxu0
  %v1881 = vadd.f32 0.0, %v1880
  %v1882 = vpop.f32.mrf.mxu0
  %v1883 = vadd.f32 0.0, %v1882
  %1884 = vmatmul.bf16.gmra.mxu0 %v1281
  %v1885 = vpop.f32.mrf.mxu0
  %v1886 = vadd.f32 0.0, %v1885
  %v1887 = vpop.f32.mrf.mxu0
  %v1888 = vadd.f32 0.0, %v1887
  %1889 = vmatmul.bf16.gmra.mxu0 %v1284
  %v1890 = vpop.f32.mrf.mxu0
  %v1891 = vadd.f32 0.0, %v1890
  %v1892 = vpop.f32.mrf.mxu0
  %v1893 = vadd.f32 0.0, %v1892
  %1894 = vmatmul.bf16.gmra.mxu0 %v1287
  %v1895 = vpop.f32.mrf.mxu0
  %v1896 = vadd.f32 0.0, %v1895
  %v1897 = vpop.f32.mrf.mxu0
  %v1898 = vadd.f32 0.0, %v1897
  %1899 = vmatmul.bf16.gmra.mxu0 %v1290
  %v1900 = vpop.f32.mrf.mxu0
  %v1901 = vadd.f32 0.0, %v1900
  %v1902 = vpop.f32.mrf.mxu0
  %v1903 = vadd.f32 0.0, %v1902
  %1904 = vmatmul.bf16.gmra.mxu0 %v1293
  %v1905 = vpop.f32.mrf.mxu0
  %v1906 = vadd.f32 0.0, %v1905
  %v1907 = vpop.f32.mrf.mxu0
  %v1908 = vadd.f32 0.0, %v1907
  %1909 = vmatmul.bf16.gmra.mxu0 %v1296
  %v1910 = vpop.f32.mrf.mxu0
  %v1911 = vadd.f32 0.0, %v1910
  %v1912 = vpop.f32.mrf.mxu0
  %v1913 = vadd.f32 0.0, %v1912
  %1914 = vmatmul.bf16.gmra.mxu0 %v1299
  %v1915 = vpop.f32.mrf.mxu0
  %v1916 = vadd.f32 0.0, %v1915
  %v1917 = vpop.f32.mrf.mxu0
  %v1918 = vadd.f32 0.0, %v1917
  %1919 = vmatmul.bf16.gmra.mxu0 %v1302
  %v1920 = vpop.f32.mrf.mxu0
  %v1921 = vadd.f32 0.0, %v1920
  %v1922 = vpop.f32.mrf.mxu0
  %v1923 = vadd.f32 0.0, %v1922
  %1924 = vmatmul.bf16.gmra.mxu0 %v1305
  %v1925 = vpop.f32.mrf.mxu0
  %v1926 = vadd.f32 0.0, %v1925
  %v1927 = vpop.f32.mrf.mxu0
  %v1928 = vadd.f32 0.0, %v1927
  %1929 = vmatmul.bf16.gmra.mxu0 %v1308
  %v1930 = vpop.f32.mrf.mxu0
  %v1931 = vadd.f32 0.0, %v1930
  %v1932 = vpop.f32.mrf.mxu0
  %v1933 = vadd.f32 0.0, %v1932
  %1934 = vmatmul.bf16.gmra.mxu0 %v1311
  %v1935 = vpop.f32.mrf.mxu0
  %v1936 = vadd.f32 0.0, %v1935
  %v1937 = vpop.f32.mrf.mxu0
  %v1938 = vadd.f32 0.0, %v1937
  %1939 = vmatmul.bf16.gmra.mxu0 %v1314
  %v1940 = vpop.f32.mrf.mxu0
  %v1941 = vadd.f32 0.0, %v1940
  %v1942 = vpop.f32.mrf.mxu0
  %v1943 = vadd.f32 0.0, %v1942
  %1944 = vmatmul.bf16.gmra.mxu0 %v1317
  %v1945 = vpop.f32.mrf.mxu0
  %v1946 = vadd.f32 0.0, %v1945
  %v1947 = vpop.f32.mrf.mxu0
  %v1948 = vadd.f32 0.0, %v1947
  %1949 = vmatmul.bf16.gmra.mxu0 %v1320
  %v1950 = vpop.f32.mrf.mxu0
  %v1951 = vadd.f32 0.0, %v1950
  %v1952 = vpop.f32.mrf.mxu0
  %v1953 = vadd.f32 0.0, %v1952
  %1954 = vmatmul.bf16.gmra.mxu0 %v1323
  %v1955 = vpop.f32.mrf.mxu0
  %v1956 = vadd.f32 0.0, %v1955
  %v1957 = vpop.f32.mrf.mxu0
  %v1958 = vadd.f32 0.0, %v1957
  %1959 = vmatmul.bf16.gmra.mxu0 %v1326
  %v1960 = vpop.f32.mrf.mxu0
  %v1961 = vadd.f32 0.0, %v1960
  %v1962 = vpop.f32.mrf.mxu0
  %v1963 = vadd.f32 0.0, %v1962
  %1964 = vmatmul.bf16.gmra.mxu0 %v1329
  %v1965 = vpop.f32.mrf.mxu0
  %v1966 = vadd.f32 0.0, %v1965
  %v1967 = vpop.f32.mrf.mxu0
  %v1968 = vadd.f32 0.0, %v1967
  %1969 = vmatmul.bf16.gmra.mxu0 %v1332
  %v1970 = vpop.f32.mrf.mxu0
  %v1971 = vadd.f32 0.0, %v1970
  %v1972 = vpop.f32.mrf.mxu0
  %v1973 = vadd.f32 0.0, %v1972
  %1974 = vmatmul.bf16.gmra.mxu0 %v1335
  %v1975 = vpop.f32.mrf.mxu0
  %v1976 = vadd.f32 0.0, %v1975
  %v1977 = vpop.f32.mrf.mxu0
  %v1978 = vadd.f32 0.0, %v1977
  %1979 = vmatmul.bf16.gmra.mxu0 %v1338
  %v1980 = vpop.f32.mrf.mxu0
  %v1981 = vadd.f32 0.0, %v1980
  %v1982 = vpop.f32.mrf.mxu0
  %v1983 = vadd.f32 0.0, %v1982
  %1984 = vmatmul.bf16.gmra.mxu0 %v1341
  %v1985 = vpop.f32.mrf.mxu0
  %v1986 = vadd.f32 0.0, %v1985
  %v1987 = vpop.f32.mrf.mxu0
  %v1988 = vadd.f32 0.0, %v1987
  %1989 = vmatmul.bf16.gmra.mxu0 %v1344
  %v1990 = vpop.f32.mrf.mxu0
  %v1991 = vadd.f32 0.0, %v1990
  %v1992 = vpop.f32.mrf.mxu0
  %v1993 = vadd.f32 0.0, %v1992
  %1994 = vdwg.mxu0
  %v1995 = vmax.f32 %v1356, 0.0
  %v1996 = vmax.f32 %v1358, 0.0
  %v1997 = vmax.f32 %v1361, 0.0
  %v1998 = vmax.f32 %v1363, 0.0
  %v1999 = vmax.f32 %v1366, 0.0
  %v2000 = vmax.f32 %v1368, 0.0
  %v2001 = vmax.f32 %v1371, 0.0
  %v2002 = vmax.f32 %v1373, 0.0
  %v2003 = vmax.f32 %v1376, 0.0
  %v2004 = vmax.f32 %v1378, 0.0
  %v2005 = vmax.f32 %v1381, 0.0
  %v2006 = vmax.f32 %v1383, 0.0
  %v2007 = vmax.f32 %v1386, 0.0
  %v2008 = vmax.f32 %v1388, 0.0
  %v2009 = vmax.f32 %v1391, 0.0
  %v2010 = vmax.f32 %v1393, 0.0
  %v2011 = vmax.f32 %v1396, 0.0
  %v2012 = vmax.f32 %v1398, 0.0
  %v2013 = vmax.f32 %v1401, 0.0
  %v2014 = vmax.f32 %v1403, 0.0
  %v2015 = vmax.f32 %v1406, 0.0
  %v2016 = vmax.f32 %v1408, 0.0
  %v2017 = vmax.f32 %v1411, 0.0
  %v2018 = vmax.f32 %v1413, 0.0
  %v2019 = vmax.f32 %v1416, 0.0
  %v2020 = vmax.f32 %v1418, 0.0
  %v2021 = vmax.f32 %v1421, 0.0
  %v2022 = vmax.f32 %v1423, 0.0
  %v2023 = vmax.f32 %v1426, 0.0
  %v2024 = vmax.f32 %v1428, 0.0
  %v2025 = vmax.f32 %v1431, 0.0
  %v2026 = vmax.f32 %v1433, 0.0
  %v2027 = vmax.f32 %v1436, 0.0
  %v2028 = vmax.f32 %v1438, 0.0
  %v2029 = vmax.f32 %v1441, 0.0
  %v2030 = vmax.f32 %v1443, 0.0
  %v2031 = vmax.f32 %v1446, 0.0
  %v2032 = vmax.f32 %v1448, 0.0
  %v2033 = vmax.f32 %v1451, 0.0
  %v2034 = vmax.f32 %v1453, 0.0
  %v2035 = vmax.f32 %v1456, 0.0
  %v2036 = vmax.f32 %v1458, 0.0
  %v2037 = vmax.f32 %v1461, 0.0
  %v2038 = vmax.f32 %v1463, 0.0
  %v2039 = vmax.f32 %v1466, 0.0
  %v2040 = vmax.f32 %v1468, 0.0
  %v2041 = vmax.f32 %v1471, 0.0
  %v2042 = vmax.f32 %v1473, 0.0
  %v2043 = vmax.f32 %v1476, 0.0
  %v2044 = vmax.f32 %v1478, 0.0
  %v2045 = vmax.f32 %v1481, 0.0
  %v2046 = vmax.f32 %v1483, 0.0
  %v2047 = vmax.f32 %v1486, 0.0
  %v2048 = vmax.f32 %v1488, 0.0
  %v2049 = vmax.f32 %v1491, 0.0
  %v2050 = vmax.f32 %v1493, 0.0
  %v2051 = vmax.f32 %v1496, 0.0
  %v2052 = vmax.f32 %v1498, 0.0
  %v2053 = vmax.f32 %v1501, 0.0
  %v2054 = vmax.f32 %v1503, 0.0
  %v2055 = vmax.f32 %v1506, 0.0
  %v2056 = vmax.f32 %v1508, 0.0
  %v2057 = vmax.f32 %v1511, 0.0
  %v2058 = vmax.f32 %v1513, 0.0
  %v2059 = vmax.f32 %v1516, 0.0
  %v2060 = vmax.f32 %v1518, 0.0
  %v2061 = vmax.f32 %v1521, 0.0
  %v2062 = vmax.f32 %v1523, 0.0
  %v2063 = vmax.f32 %v1526, 0.0
  %v2064 = vmax.f32 %v1528, 0.0
  %v2065 = vmax.f32 %v1531, 0.0
  %v2066 = vmax.f32 %v1533, 0.0
  %v2067 = vmax.f32 %v1536, 0.0
  %v2068 = vmax.f32 %v1538, 0.0
  %v2069 = vmax.f32 %v1541, 0.0
  %v2070 = vmax.f32 %v1543, 0.0
  %v2071 = vmax.f32 %v1546, 0.0
  %v2072 = vmax.f32 %v1548, 0.0
  %v2073 = vmax.f32 %v1551, 0.0
  %v2074 = vmax.f32 %v1553, 0.0
  %v2075 = vmax.f32 %v1556, 0.0
  %v2076 = vmax.f32 %v1558, 0.0
  %v2077 = vmax.f32 %v1561, 0.0
  %v2078 = vmax.f32 %v1563, 0.0
  %v2079 = vmax.f32 %v1566, 0.0
  %v2080 = vmax.f32 %v1568, 0.0
  %v2081 = vmax.f32 %v1571, 0.0
  %v2082 = vmax.f32 %v1573, 0.0
  %v2083 = vmax.f32 %v1576, 0.0
  %v2084 = vmax.f32 %v1578, 0.0
  %v2085 = vmax.f32 %v1581, 0.0
  %v2086 = vmax.f32 %v1583, 0.0
  %v2087 = vmax.f32 %v1586, 0.0
  %v2088 = vmax.f32 %v1588, 0.0
  %v2089 = vmax.f32 %v1591, 0.0
  %v2090 = vmax.f32 %v1593, 0.0
  %v2091 = vmax.f32 %v1596, 0.0
  %v2092 = vmax.f32 %v1598, 0.0
  %v2093 = vmax.f32 %v1601, 0.0
  %v2094 = vmax.f32 %v1603, 0.0
  %v2095 = vmax.f32 %v1606, 0.0
  %v2096 = vmax.f32 %v1608, 0.0
  %v2097 = vmax.f32 %v1611, 0.0
  %v2098 = vmax.f32 %v1613, 0.0
  %v2099 = vmax.f32 %v1616, 0.0
  %v2100 = vmax.f32 %v1618, 0.0
  %v2101 = vmax.f32 %v1621, 0.0
  %v2102 = vmax.f32 %v1623, 0.0
  %v2103 = vmax.f32 %v1626, 0.0
  %v2104 = vmax.f32 %v1628, 0.0
  %v2105 = vmax.f32 %v1631, 0.0
  %v2106 = vmax.f32 %v1633, 0.0
  %v2107 = vmax.f32 %v1636, 0.0
  %v2108 = vmax.f32 %v1638, 0.0
  %v2109 = vmax.f32 %v1641, 0.0
  %v2110 = vmax.f32 %v1643, 0.0
  %v2111 = vmax.f32 %v1646, 0.0
  %v2112 = vmax.f32 %v1648, 0.0
  %v2113 = vmax.f32 %v1651, 0.0
  %v2114 = vmax.f32 %v1653, 0.0
  %v2115 = vmax.f32 %v1656, 0.0
  %v2116 = vmax.f32 %v1658, 0.0
  %v2117 = vmax.f32 %v1661, 0.0
  %v2118 = vmax.f32 %v1663, 0.0
  %v2119 = vmax.f32 %v1666, 0.0
  %v2120 = vmax.f32 %v1668, 0.0
  %v2121 = vmax.f32 %v1671, 0.0
  %v2122 = vmax.f32 %v1673, 0.0
  %v2123 = vmax.f32 %v1676, 0.0
  %v2124 = vmax.f32 %v1678, 0.0
  %v2125 = vmax.f32 %v1681, 0.0
  %v2126 = vmax.f32 %v1683, 0.0
  %v2127 = vmax.f32 %v1686, 0.0
  %v2128 = vmax.f32 %v1688, 0.0
  %v2129 = vmax.f32 %v1691, 0.0
  %v2130 = vmax.f32 %v1693, 0.0
  %v2131 = vmax.f32 %v1696, 0.0
  %v2132 = vmax.f32 %v1698, 0.0
  %v2133 = vmax.f32 %v1701, 0.0
  %v2134 = vmax.f32 %v1703, 0.0
  %v2135 = vmax.f32 %v1706, 0.0
  %v2136 = vmax.f32 %v1708, 0.0
  %v2137 = vmax.f32 %v1711, 0.0
  %v2138 = vmax.f32 %v1713, 0.0
  %v2139 = vmax.f32 %v1716, 0.0
  %v2140 = vmax.f32 %v1718, 0.0
  %v2141 = vmax.f32 %v1721, 0.0
  %v2142 = vmax.f32 %v1723, 0.0
  %v2143 = vmax.f32 %v1726, 0.0
  %v2144 = vmax.f32 %v1728, 0.0
  %v2145 = vmax.f32 %v1731, 0.0
  %v2146 = vmax.f32 %v1733, 0.0
  %v2147 = vmax.f32 %v1736, 0.0
  %v2148 = vmax.f32 %v1738, 0.0
  %v2149 = vmax.f32 %v1741, 0.0
  %v2150 = vmax.f32 %v1743, 0.0
  %v2151 = vmax.f32 %v1746, 0.0
  %v2152 = vmax.f32 %v1748, 0.0
  %v2153 = vmax.f32 %v1751, 0.0
  %v2154 = vmax.f32 %v1753, 0.0
  %v2155 = vmax.f32 %v1756, 0.0
  %v2156 = vmax.f32 %v1758, 0.0
  %v2157 = vmax.f32 %v1761, 0.0
  %v2158 = vmax.f32 %v1763, 0.0
  %v2159 = vmax.f32 %v1766, 0.0
  %v2160 = vmax.f32 %v1768, 0.0
  %v2161 = vmax.f32 %v1771, 0.0
  %v2162 = vmax.f32 %v1773, 0.0
  %v2163 = vmax.f32 %v1776, 0.0
  %v2164 = vmax.f32 %v1778, 0.0
  %v2165 = vmax.f32 %v1781, 0.0
  %v2166 = vmax.f32 %v1783, 0.0
  %v2167 = vmax.f32 %v1786, 0.0
  %v2168 = vmax.f32 %v1788, 0.0
  %v2169 = vmax.f32 %v1791, 0.0
  %v2170 = vmax.f32 %v1793, 0.0
  %v2171 = vmax.f32 %v1796, 0.0
  %v2172 = vmax.f32 %v1798, 0.0
  %v2173 = vmax.f32 %v1801, 0.0
  %v2174 = vmax.f32 %v1803, 0.0
  %v2175 = vmax.f32 %v1806, 0.0
  %v2176 = vmax.f32 %v1808, 0.0
  %v2177 = vmax.f32 %v1811, 0.0
  %v2178 = vmax.f32 %v1813, 0.0
  %v2179 = vmax.f32 %v1816, 0.0
  %v2180 = vmax.f32 %v1818, 0.0
  %v2181 = vmax.f32 %v1821, 0.0
  %v2182 = vmax.f32 %v1823, 0.0
  %v2183 = vmax.f32 %v1826, 0.0
  %v2184 = vmax.f32 %v1828, 0.0
  %v2185 = vmax.f32 %v1831, 0.0
  %v2186 = vmax.f32 %v1833, 0.0
  %v2187 = vmax.f32 %v1836, 0.0
  %v2188 = vmax.f32 %v1838, 0.0
  %v2189 = vmax.f32 %v1841, 0.0
  %v2190 = vmax.f32 %v1843, 0.0
  %v2191 = vmax.f32 %v1846, 0.0
  %v2192 = vmax.f32 %v1848, 0.0
  %v2193 = vmax.f32 %v1851, 0.0
  %v2194 = vmax.f32 %v1853, 0.0
  %v2195 = vmax.f32 %v1856, 0.0
  %v2196 = vmax.f32 %v1858, 0.0
  %v2197 = vmax.f32 %v1861, 0.0
  %v2198 = vmax.f32 %v1863, 0.0
  %v2199 = vmax.f32 %v1866, 0.0
  %v2200 = vmax.f32 %v1868, 0.0
  %v2201 = vmax.f32 %v1871, 0.0
  %v2202 = vmax.f32 %v1873, 0.0
  %v2203 = vmax.f32 %v1876, 0.0
  %v2204 = vmax.f32 %v1878, 0.0
  %v2205 = vmax.f32 %v1881, 0.0
  %v2206 = vmax.f32 %v1883, 0.0
  %v2207 = vmax.f32 %v1886, 0.0
  %v2208 = vmax.f32 %v1888, 0.0
  %v2209 = vmax.f32 %v1891, 0.0
  %v2210 = vmax.f32 %v1893, 0.0
  %v2211 = vmax.f32 %v1896, 0.0
  %v2212 = vmax.f32 %v1898, 0.0
  %v2213 = vmax.f32 %v1901, 0.0
  %v2214 = vmax.f32 %v1903, 0.0
  %v2215 = vmax.f32 %v1906, 0.0
  %v2216 = vmax.f32 %v1908, 0.0
  %v2217 = vmax.f32 %v1911, 0.0
  %v2218 = vmax.f32 %v1913, 0.0
  %v2219 = vmax.f32 %v1916, 0.0
  %v2220 = vmax.f32 %v1918, 0.0
  %v2221 = vmax.f32 %v1921, 0.0
  %v2222 = vmax.f32 %v1923, 0.0
  %v2223 = vmax.f32 %v1926, 0.0
  %v2224 = vmax.f32 %v1928, 0.0
  %v2225 = vmax.f32 %v1931, 0.0
  %v2226 = vmax.f32 %v1933, 0.0
  %v2227 = vmax.f32 %v1936, 0.0
  %v2228 = vmax.f32 %v1938, 0.0
  %v2229 = vmax.f32 %v1941, 0.0
  %v2230 = vmax.f32 %v1943, 0.0
  %v2231 = vmax.f32 %v1946, 0.0
  %v2232 = vmax.f32 %v1948, 0.0
  %v2233 = vmax.f32 %v1951, 0.0
  %v2234 = vmax.f32 %v1953, 0.0
  %v2235 = vmax.f32 %v1956, 0.0
  %v2236 = vmax.f32 %v1958, 0.0
  %v2237 = vmax.f32 %v1961, 0.0
  %v2238 = vmax.f32 %v1963, 0.0
  %v2239 = vmax.f32 %v1966, 0.0
  %v2240 = vmax.f32 %v1968, 0.0
  %v2241 = vmax.f32 %v1971, 0.0
  %v2242 = vmax.f32 %v1973, 0.0
  %v2243 = vmax.f32 %v1976, 0.0
  %v2244 = vmax.f32 %v1978, 0.0
  %v2245 = vmax.f32 %v1981, 0.0
  %v2246 = vmax.f32 %v1983, 0.0
  %v2247 = vmax.f32 %v1986, 0.0
  %v2248 = vmax.f32 %v1988, 0.0
  %v2249 = vmax.f32 %v1991, 0.0
  %v2250 = vmax.f32 %v1993, 0.0
  %v2251 = vpack.c.bf16 %v1996, %v1995
  %v2252 = vpack.c.bf16 %v1998, %v1997
  %v2253 = vpack.c.bf16 %v2000, %v1999
  %v2254 = vpack.c.bf16 %v2002, %v2001
  %v2255 = vpack.c.bf16 %v2004, %v2003
  %v2256 = vpack.c.bf16 %v2006, %v2005
  %v2257 = vpack.c.bf16 %v2008, %v2007
  %v2258 = vpack.c.bf16 %v2010, %v2009
  %v2259 = vpack.c.bf16 %v2012, %v2011
  %v2260 = vpack.c.bf16 %v2014, %v2013
  %v2261 = vpack.c.bf16 %v2016, %v2015
  %v2262 = vpack.c.bf16 %v2018, %v2017
  %v2263 = vpack.c.bf16 %v2020, %v2019
  %v2264 = vpack.c.bf16 %v2022, %v2021
  %v2265 = vpack.c.bf16 %v2024, %v2023
  %v2266 = vpack.c.bf16 %v2026, %v2025
  %v2267 = vpack.c.bf16 %v2028, %v2027
  %v2268 = vpack.c.bf16 %v2030, %v2029
  %v2269 = vpack.c.bf16 %v2032, %v2031
  %v2270 = vpack.c.bf16 %v2034, %v2033
  %v2271 = vpack.c.bf16 %v2036, %v2035
  %v2272 = vpack.c.bf16 %v2038, %v2037
  %v2273 = vpack.c.bf16 %v2040, %v2039
  %v2274 = vpack.c.bf16 %v2042, %v2041
  %v2275 = vpack.c.bf16 %v2044, %v2043
  %v2276 = vpack.c.bf16 %v2046, %v2045
  %v2277 = vpack.c.bf16 %v2048, %v2047
  %v2278 = vpack.c.bf16 %v2050, %v2049
  %v2279 = vpack.c.bf16 %v2052, %v2051
  %v2280 = vpack.c.bf16 %v2054, %v2053
  %v2281 = vpack.c.bf16 %v2056, %v2055
  %v2282 = vpack.c.bf16 %v2058, %v2057
  %v2283 = vpack.c.bf16 %v2060, %v2059
  %v2284 = vpack.c.bf16 %v2062, %v2061
  %v2285 = vpack.c.bf16 %v2064, %v2063
  %v2286 = vpack.c.bf16 %v2066, %v2065
  %v2287 = vpack.c.bf16 %v2068, %v2067
  %v2288 = vpack.c.bf16 %v2070, %v2069
  %v2289 = vpack.c.bf16 %v2072, %v2071
  %v2290 = vpack.c.bf16 %v2074, %v2073
  %v2291 = vpack.c.bf16 %v2076, %v2075
  %v2292 = vpack.c.bf16 %v2078, %v2077
  %v2293 = vpack.c.bf16 %v2080, %v2079
  %v2294 = vpack.c.bf16 %v2082, %v2081
  %v2295 = vpack.c.bf16 %v2084, %v2083
  %v2296 = vpack.c.bf16 %v2086, %v2085
  %v2297 = vpack.c.bf16 %v2088, %v2087
  %v2298 = vpack.c.bf16 %v2090, %v2089
  %v2299 = vpack.c.bf16 %v2092, %v2091
  %v2300 = vpack.c.bf16 %v2094, %v2093
  %v2301 = vpack.c.bf16 %v2096, %v2095
  %v2302 = vpack.c.bf16 %v2098, %v2097
  %v2303 = vpack.c.bf16 %v2100, %v2099
  %v2304 = vpack.c.bf16 %v2102, %v2101
  %v2305 = vpack.c.bf16 %v2104, %v2103
  %v2306 = vpack.c.bf16 %v2106, %v2105
  %v2307 = vpack.c.bf16 %v2108, %v2107
  %v2308 = vpack.c.bf16 %v2110, %v2109
  %v2309 = vpack.c.bf16 %v2112, %v2111
  %v2310 = vpack.c.bf16 %v2114, %v2113
  %v2311 = vpack.c.bf16 %v2116, %v2115
  %v2312 = vpack.c.bf16 %v2118, %v2117
  %v2313 = vpack.c.bf16 %v2120, %v2119
  %v2314 = vpack.c.bf16 %v2122, %v2121
  %v2315 = vpack.c.bf16 %v2124, %v2123
  %v2316 = vpack.c.bf16 %v2126, %v2125
  %v2317 = vpack.c.bf16 %v2128, %v2127
  %v2318 = vpack.c.bf16 %v2130, %v2129
  %v2319 = vpack.c.bf16 %v2132, %v2131
  %v2320 = vpack.c.bf16 %v2134, %v2133
  %v2321 = vpack.c.bf16 %v2136, %v2135
  %v2322 = vpack.c.bf16 %v2138, %v2137
  %v2323 = vpack.c.bf16 %v2140, %v2139
  %v2324 = vpack.c.bf16 %v2142, %v2141
  %v2325 = vpack.c.bf16 %v2144, %v2143
  %v2326 = vpack.c.bf16 %v2146, %v2145
  %v2327 = vpack.c.bf16 %v2148, %v2147
  %v2328 = vpack.c.bf16 %v2150, %v2149
  %v2329 = vpack.c.bf16 %v2152, %v2151
  %v2330 = vpack.c.bf16 %v2154, %v2153
  %v2331 = vpack.c.bf16 %v2156, %v2155
  %v2332 = vpack.c.bf16 %v2158, %v2157
  %v2333 = vpack.c.bf16 %v2160, %v2159
  %v2334 = vpack.c.bf16 %v2162, %v2161
  %v2335 = vpack.c.bf16 %v2164, %v2163
  %v2336 = vpack.c.bf16 %v2166, %v2165
  %v2337 = vpack.c.bf16 %v2168, %v2167
  %v2338 = vpack.c.bf16 %v2170, %v2169
  %v2339 = vpack.c.bf16 %v2172, %v2171
  %v2340 = vpack.c.bf16 %v2174, %v2173
  %v2341 = vpack.c.bf16 %v2176, %v2175
  %v2342 = vpack.c.bf16 %v2178, %v2177
  %v2343 = vpack.c.bf16 %v2180, %v2179
  %v2344 = vpack.c.bf16 %v2182, %v2181
  %v2345 = vpack.c.bf16 %v2184, %v2183
  %v2346 = vpack.c.bf16 %v2186, %v2185
  %v2347 = vpack.c.bf16 %v2188, %v2187
  %v2348 = vpack.c.bf16 %v2190, %v2189
  %v2349 = vpack.c.bf16 %v2192, %v2191
  %v2350 = vpack.c.bf16 %v2194, %v2193
  %v2351 = vpack.c.bf16 %v2196, %v2195
  %v2352 = vpack.c.bf16 %v2198, %v2197
  %v2353 = vpack.c.bf16 %v2200, %v2199
  %v2354 = vpack.c.bf16 %v2202, %v2201
  %v2355 = vpack.c.bf16 %v2204, %v2203
  %v2356 = vpack.c.bf16 %v2206, %v2205
  %v2357 = vpack.c.bf16 %v2208, %v2207
  %v2358 = vpack.c.bf16 %v2210, %v2209
  %v2359 = vpack.c.bf16 %v2212, %v2211
  %v2360 = vpack.c.bf16 %v2214, %v2213
  %v2361 = vpack.c.bf16 %v2216, %v2215
  %v2362 = vpack.c.bf16 %v2218, %v2217
  %v2363 = vpack.c.bf16 %v2220, %v2219
  %v2364 = vpack.c.bf16 %v2222, %v2221
  %v2365 = vpack.c.bf16 %v2224, %v2223
  %v2366 = vpack.c.bf16 %v2226, %v2225
  %v2367 = vpack.c.bf16 %v2228, %v2227
  %v2368 = vpack.c.bf16 %v2230, %v2229
  %v2369 = vpack.c.bf16 %v2232, %v2231
  %v2370 = vpack.c.bf16 %v2234, %v2233
  %v2371 = vpack.c.bf16 %v2236, %v2235
  %v2372 = vpack.c.bf16 %v2238, %v2237
  %v2373 = vpack.c.bf16 %v2240, %v2239
  %v2374 = vpack.c.bf16 %v2242, %v2241
  %v2375 = vpack.c.bf16 %v2244, %v2243
  %v2376 = vpack.c.bf16 %v2246, %v2245
  %v2377 = vpack.c.bf16 %v2248, %v2247
  %v2378 = vpack.c.bf16 %v2250, %v2249
  %v2379 = vld [vmem:[%s2] sm:$0xff]
  %v2380 = vld [vmem:[%s2 + $0x8] sm:$0xff]
  %v2381 = vld [vmem:[%s2 + $0x10] sm:$0xff]
  %v2382 = vld [vmem:[%s2 + $0x18] sm:$0xff]
  %v2383 = vld [vmem:[%s2 + $0x20] sm:$0xff]
  %v2384 = vld [vmem:[%s2 + $0x28] sm:$0xff]
  %v2385 = vld [vmem:[%s2 + $0x30] sm:$0xff]
  %v2386 = vld [vmem:[%s2 + $0x38] sm:$0xff]
  %v2395 = vunpack.c.l.b16 %v2379
  %v2396 = vunpack.c.h.b16 %v2379
  %v2397 = vunpack.c.l.b16 %v2380
  %v2398 = vunpack.c.h.b16 %v2380
  %v2399 = vunpack.c.l.b16 %v2381
  %v2400 = vunpack.c.h.b16 %v2381
  %v2401 = vunpack.c.l.b16 %v2382
  %v2402 = vunpack.c.h.b16 %v2382
  %v2403 = vunpack.c.l.b16 %v2383
  %v2404 = vunpack.c.h.b16 %v2383
  %v2405 = vunpack.c.l.b16 %v2384
  %v2406 = vunpack.c.h.b16 %v2384
  %v2407 = vunpack.c.l.b16 %v2385
  %v2408 = vunpack.c.h.b16 %v2385
  %v2409 = vunpack.c.l.b16 %v2386
  %v2410 = vunpack.c.h.b16 %v2386
  %v2411 = vpack.c.b16 %v2395, %v2395
  %v2412 = vpack.c.b16 %v2396, %v2396
  %v2413 = vpack.c.b16 %v2397, %v2397
  %v2414 = vpack.c.b16 %v2398, %v2398
  %v2415 = vpack.c.b16 %v2399, %v2399
  %v2416 = vpack.c.b16 %v2400, %v2400
  %v2417 = vpack.c.b16 %v2401, %v2401
  %v2418 = vpack.c.b16 %v2402, %v2402
  %v2419 = vpack.c.b16 %v2403, %v2403
  %v2420 = vpack.c.b16 %v2404, %v2404
  %v2421 = vpack.c.b16 %v2405, %v2405
  %v2422 = vpack.c.b16 %v2406, %v2406
  %v2423 = vpack.c.b16 %v2407, %v2407
  %v2424 = vpack.c.b16 %v2408, %v2408
  %v2425 = vpack.c.b16 %v2409, %v2409
  %v2426 = vpack.c.b16 %v2410, %v2410
  %2443 = vmatpush.bf16.msra.mxu0 %v2258
  %2444 = vmatpush.bf16.msra.mxu0 %v2257
  %2445 = vmatpush.bf16.msra.mxu0 %v2256
  %2446 = vmatpush.bf16.msra.mxu0 %v2255
  %2447 = vmatpush.bf16.msra.mxu0 %v2254
  %2448 = vmatpush.bf16.msra.mxu0 %v2253
  %2449 = vmatpush.bf16.msra.mxu0 %v2252
  %2450 = vmatpush.bf16.msra.mxu0 %v2251
  %2451 = vmatmul.bf16.gmra.mxu0 %v2411
  %v2452 = vpop.f32.mrf.mxu0
  %v2453 = vadd.f32 0.0, %v2452
  %v2454 = vpop.f32.mrf.mxu0
  %2455 = vdwg.mxu0
  %2456 = vmatpush.bf16.msra.mxu0 %v2266
  %2457 = vmatpush.bf16.msra.mxu0 %v2265
  %2458 = vmatpush.bf16.msra.mxu0 %v2264
  %2459 = vmatpush.bf16.msra.mxu0 %v2263
  %2460 = vmatpush.bf16.msra.mxu0 %v2262
  %2461 = vmatpush.bf16.msra.mxu0 %v2261
  %2462 = vmatpush.bf16.msra.mxu0 %v2260
  %2463 = vmatpush.bf16.msra.mxu0 %v2259
  %2464 = vmatmul.bf16.gmra.mxu0 %v2412
  %v2465 = vpop.f32.mrf.mxu0
  %v2466 = vadd.f32 %v2453, %v2465
  %v2467 = vpop.f32.mrf.mxu0
  %2468 = vdwg.mxu0
  %2469 = vmatpush.bf16.msra.mxu0 %v2274
  %2470 = vmatpush.bf16.msra.mxu0 %v2273
  %2471 = vmatpush.bf16.msra.mxu0 %v2272
  %2472 = vmatpush.bf16.msra.mxu0 %v2271
  %2473 = vmatpush.bf16.msra.mxu0 %v2270
  %2474 = vmatpush.bf16.msra.mxu0 %v2269
  %2475 = vmatpush.bf16.msra.mxu0 %v2268
  %2476 = vmatpush.bf16.msra.mxu0 %v2267
  %2477 = vmatmul.bf16.gmra.mxu0 %v2413
  %v2478 = vpop.f32.mrf.mxu0
  %v2479 = vadd.f32 %v2466, %v2478
  %v2480 = vpop.f32.mrf.mxu0
  %2481 = vdwg.mxu0
  %2482 = vmatpush.bf16.msra.mxu0 %v2282
  %2483 = vmatpush.bf16.msra.mxu0 %v2281
  %2484 = vmatpush.bf16.msra.mxu0 %v2280
  %2485 = vmatpush.bf16.msra.mxu0 %v2279
  %2486 = vmatpush.bf16.msra.mxu0 %v2278
  %2487 = vmatpush.bf16.msra.mxu0 %v2277
  %2488 = vmatpush.bf16.msra.mxu0 %v2276
  %2489 = vmatpush.bf16.msra.mxu0 %v2275
  %2490 = vmatmul.bf16.gmra.mxu0 %v2414
  %v2491 = vpop.f32.mrf.mxu0
  %v2492 = vadd.f32 %v2479, %v2491
  %v2493 = vpop.f32.mrf.mxu0
  %2494 = vdwg.mxu0
  %2495 = vmatpush.bf16.msra.mxu0 %v2290
  %2496 = vmatpush.bf16.msra.mxu0 %v2289
  %2497 = vmatpush.bf16.msra.mxu0 %v2288
  %2498 = vmatpush.bf16.msra.mxu0 %v2287
  %2499 = vmatpush.bf16.msra.mxu0 %v2286
  %2500 = vmatpush.bf16.msra.mxu0 %v2285
  %2501 = vmatpush.bf16.msra.mxu0 %v2284
  %2502 = vmatpush.bf16.msra.mxu0 %v2283
  %2503 = vmatmul.bf16.gmra.mxu0 %v2415
  %v2504 = vpop.f32.mrf.mxu0
  %v2505 = vadd.f32 %v2492, %v2504
  %v2506 = vpop.f32.mrf.mxu0
  %2507 = vdwg.mxu0
  %2508 = vmatpush.bf16.msra.mxu0 %v2298
  %2509 = vmatpush.bf16.msra.mxu0 %v2297
  %2510 = vmatpush.bf16.msra.mxu0 %v2296
  %2511 = vmatpush.bf16.msra.mxu0 %v2295
  %2512 = vmatpush.bf16.msra.mxu0 %v2294
  %2513 = vmatpush.bf16.msra.mxu0 %v2293
  %2514 = vmatpush.bf16.msra.mxu0 %v2292
  %2515 = vmatpush.bf16.msra.mxu0 %v2291
  %2516 = vmatmul.bf16.gmra.mxu0 %v2416
  %v2517 = vpop.f32.mrf.mxu0
  %v2518 = vadd.f32 %v2505, %v2517
  %v2519 = vpop.f32.mrf.mxu0
  %2520 = vdwg.mxu0
  %2521 = vmatpush.bf16.msra.mxu0 %v2306
  %2522 = vmatpush.bf16.msra.mxu0 %v2305
  %2523 = vmatpush.bf16.msra.mxu0 %v2304
  %2524 = vmatpush.bf16.msra.mxu0 %v2303
  %2525 = vmatpush.bf16.msra.mxu0 %v2302
  %2526 = vmatpush.bf16.msra.mxu0 %v2301
  %2527 = vmatpush.bf16.msra.mxu0 %v2300
  %2528 = vmatpush.bf16.msra.mxu0 %v2299
  %2529 = vmatmul.bf16.gmra.mxu0 %v2417
  %v2530 = vpop.f32.mrf.mxu0
  %v2531 = vadd.f32 %v2518, %v2530
  %v2532 = vpop.f32.mrf.mxu0
  %2533 = vdwg.mxu0
  %2534 = vmatpush.bf16.msra.mxu0 %v2314
  %2535 = vmatpush.bf16.msra.mxu0 %v2313
  %2536 = vmatpush.bf16.msra.mxu0 %v2312
  %2537 = vmatpush.bf16.msra.mxu0 %v2311
  %2538 = vmatpush.bf16.msra.mxu0 %v2310
  %2539 = vmatpush.bf16.msra.mxu0 %v2309
  %2540 = vmatpush.bf16.msra.mxu0 %v2308
  %2541 = vmatpush.bf16.msra.mxu0 %v2307
  %2542 = vmatmul.bf16.gmra.mxu0 %v2418
  %v2543 = vpop.f32.mrf.mxu0
  %v2544 = vadd.f32 %v2531, %v2543
  %v2545 = vpop.f32.mrf.mxu0
  %2546 = vdwg.mxu0
  %2547 = vmatpush.bf16.msra.mxu0 %v2322
  %2548 = vmatpush.bf16.msra.mxu0 %v2321
  %2549 = vmatpush.bf16.msra.mxu0 %v2320
  %2550 = vmatpush.bf16.msra.mxu0 %v2319
  %2551 = vmatpush.bf16.msra.mxu0 %v2318
  %2552 = vmatpush.bf16.msra.mxu0 %v2317
  %2553 = vmatpush.bf16.msra.mxu0 %v2316
  %2554 = vmatpush.bf16.msra.mxu0 %v2315
  %2555 = vmatmul.bf16.gmra.mxu0 %v2419
  %v2556 = vpop.f32.mrf.mxu0
  %v2557 = vadd.f32 %v2544, %v2556
  %v2558 = vpop.f32.mrf.mxu0
  %2559 = vdwg.mxu0
  %2560 = vmatpush.bf16.msra.mxu0 %v2330
  %2561 = vmatpush.bf16.msra.mxu0 %v2329
  %2562 = vmatpush.bf16.msra.mxu0 %v2328
  %2563 = vmatpush.bf16.msra.mxu0 %v2327
  %2564 = vmatpush.bf16.msra.mxu0 %v2326
  %2565 = vmatpush.bf16.msra.mxu0 %v2325
  %2566 = vmatpush.bf16.msra.mxu0 %v2324
  %2567 = vmatpush.bf16.msra.mxu0 %v2323
  %2568 = vmatmul.bf16.gmra.mxu0 %v2420
  %v2569 = vpop.f32.mrf.mxu0
  %v2570 = vadd.f32 %v2557, %v2569
  %v2571 = vpop.f32.mrf.mxu0
  %2572 = vdwg.mxu0
  %2573 = vmatpush.bf16.msra.mxu0 %v2338
  %2574 = vmatpush.bf16.msra.mxu0 %v2337
  %2575 = vmatpush.bf16.msra.mxu0 %v2336
  %2576 = vmatpush.bf16.msra.mxu0 %v2335
  %2577 = vmatpush.bf16.msra.mxu0 %v2334
  %2578 = vmatpush.bf16.msra.mxu0 %v2333
  %2579 = vmatpush.bf16.msra.mxu0 %v2332
  %2580 = vmatpush.bf16.msra.mxu0 %v2331
  %2581 = vmatmul.bf16.gmra.mxu0 %v2421
  %v2582 = vpop.f32.mrf.mxu0
  %v2583 = vadd.f32 %v2570, %v2582
  %v2584 = vpop.f32.mrf.mxu0
  %2585 = vdwg.mxu0
  %2586 = vmatpush.bf16.msra.mxu0 %v2346
  %2587 = vmatpush.bf16.msra.mxu0 %v2345
  %2588 = vmatpush.bf16.msra.mxu0 %v2344
  %2589 = vmatpush.bf16.msra.mxu0 %v2343
  %2590 = vmatpush.bf16.msra.mxu0 %v2342
  %2591 = vmatpush.bf16.msra.mxu0 %v2341
  %2592 = vmatpush.bf16.msra.mxu0 %v2340
  %2593 = vmatpush.bf16.msra.mxu0 %v2339
  %2594 = vmatmul.bf16.gmra.mxu0 %v2422
  %v2595 = vpop.f32.mrf.mxu0
  %v2596 = vadd.f32 %v2583, %v2595
  %v2597 = vpop.f32.mrf.mxu0
  %2598 = vdwg.mxu0
  %2599 = vmatpush.bf16.msra.mxu0 %v2354
  %2600 = vmatpush.bf16.msra.mxu0 %v2353
  %2601 = vmatpush.bf16.msra.mxu0 %v2352
  %2602 = vmatpush.bf16.msra.mxu0 %v2351
  %2603 = vmatpush.bf16.msra.mxu0 %v2350
  %2604 = vmatpush.bf16.msra.mxu0 %v2349
  %2605 = vmatpush.bf16.msra.mxu0 %v2348
  %2606 = vmatpush.bf16.msra.mxu0 %v2347
  %2607 = vmatmul.bf16.gmra.mxu0 %v2423
  %v2608 = vpop.f32.mrf.mxu0
  %v2609 = vadd.f32 %v2596, %v2608
  %v2610 = vpop.f32.mrf.mxu0
  %2611 = vdwg.mxu0
  %2612 = vmatpush.bf16.msra.mxu0 %v2362
  %2613 = vmatpush.bf16.msra.mxu0 %v2361
  %2614 = vmatpush.bf16.msra.mxu0 %v2360
  %2615 = vmatpush.bf16.msra.mxu0 %v2359
  %2616 = vmatpush.bf16.msra.mxu0 %v2358
  %2617 = vmatpush.bf16.msra.mxu0 %v2357
  %2618 = vmatpush.bf16.msra.mxu0 %v2356
  %2619 = vmatpush.bf16.msra.mxu0 %v2355
  %2620 = vmatmul.bf16.gmra.mxu0 %v2424
  %v2621 = vpop.f32.mrf.mxu0
  %v2622 = vadd.f32 %v2609, %v2621
  %v2623 = vpop.f32.mrf.mxu0
  %2624 = vdwg.mxu0
  %2625 = vmatpush.bf16.msra.mxu0 %v2370
  %2626 = vmatpush.bf16.msra.mxu0 %v2369
  %2627 = vmatpush.bf16.msra.mxu0 %v2368
  %2628 = vmatpush.bf16.msra.mxu0 %v2367
  %2629 = vmatpush.bf16.msra.mxu0 %v2366
  %2630 = vmatpush.bf16.msra.mxu0 %v2365
  %2631 = vmatpush.bf16.msra.mxu0 %v2364
  %2632 = vmatpush.bf16.msra.mxu0 %v2363
  %2633 = vmatmul.bf16.gmra.mxu0 %v2425
  %v2634 = vpop.f32.mrf.mxu0
  %v2635 = vadd.f32 %v2622, %v2634
  %v2636 = vpop.f32.mrf.mxu0
  %2637 = vdwg.mxu0
  %2638 = vmatpush.bf16.msra.mxu0 %v2378
  %2639 = vmatpush.bf16.msra.mxu0 %v2377
  %2640 = vmatpush.bf16.msra.mxu0 %v2376
  %2641 = vmatpush.bf16.msra.mxu0 %v2375
  %2642 = vmatpush.bf16.msra.mxu0 %v2374
  %2643 = vmatpush.bf16.msra.mxu0 %v2373
  %2644 = vmatpush.bf16.msra.mxu0 %v2372
  %2645 = vmatpush.bf16.msra.mxu0 %v2371
  %2646 = vmatmul.bf16.gmra.mxu0 %v2426
  %v2647 = vpop.f32.mrf.mxu0
  %v2648 = vadd.f32 %v2635, %v2647
  %v2649 = vpop.f32.mrf.mxu0
  %2650 = vdwg.mxu0
  %v2651 = vmul.f32 %v2648, 0.00390625
  %v2652 = vpack.c.bf16 %v2651, %v2651
  %v2653 = vld [vmem:[%s3] sm:$0xff]
  %v2654 = vld [vmem:[%s3 + $0x8] sm:$0xff]
  %v2655 = vld [vmem:[%s3 + $0x10] sm:$0xff]
  %v2656 = vld [vmem:[%s3 + $0x18] sm:$0xff]
  %v2657 = vld [vmem:[%s3 + $0x20] sm:$0xff]
  %v2658 = vld [vmem:[%s3 + $0x28] sm:$0xff]
  %v2659 = vld [vmem:[%s3 + $0x30] sm:$0xff]
  %v2660 = vld [vmem:[%s3 + $0x38] sm:$0xff]
  %v2661 = vld [vmem:[%s3 + $0x40] sm:$0xff]
  %v2662 = vld [vmem:[%s3 + $0x48] sm:$0xff]
  %v2663 = vld [vmem:[%s3 + $0x50] sm:$0xff]
  %v2664 = vld [vmem:[%s3 + $0x58] sm:$0xff]
  %v2665 = vld [vmem:[%s3 + $0x60] sm:$0xff]
  %v2666 = vld [vmem:[%s3 + $0x68] sm:$0xff]
  %v2667 = vld [vmem:[%s3 + $0x70] sm:$0xff]
  %v2668 = vld [vmem:[%s3 + $0x78] sm:$0xff]
  %v2669 = vld [vmem:[%s4] sm:$0x3]
  %v2671 = vperm.slane %v2669, 0
  %v2672 = vperm.slane %v2669, 1
  %v2691 = vunpack.c.l.b16 %v2653
  %v2692 = vunpack.c.h.b16 %v2653
  %v2693 = vunpack.c.l.b16 %v2654
  %v2694 = vunpack.c.h.b16 %v2654
  %v2695 = vunpack.c.l.b16 %v2655
  %v2696 = vunpack.c.h.b16 %v2655
  %v2697 = vunpack.c.l.b16 %v2656
  %v2698 = vunpack.c.h.b16 %v2656
  %v2699 = vunpack.c.l.b16 %v2657
  %v2700 = vunpack.c.h.b16 %v2657
  %v2701 = vunpack.c.l.b16 %v2658
  %v2702 = vunpack.c.h.b16 %v2658
  %v2703 = vunpack.c.l.b16 %v2659
  %v2704 = vunpack.c.h.b16 %v2659
  %v2705 = vunpack.c.l.b16 %v2660
  %v2706 = vunpack.c.h.b16 %v2660
  %v2707 = vunpack.c.l.b16 %v2661
  %v2708 = vunpack.c.h.b16 %v2661
  %v2709 = vunpack.c.l.b16 %v2662
  %v2710 = vunpack.c.h.b16 %v2662
  %v2711 = vunpack.c.l.b16 %v2663
  %v2712 = vunpack.c.h.b16 %v2663
  %v2713 = vunpack.c.l.b16 %v2664
  %v2714 = vunpack.c.h.b16 %v2664
  %v2715 = vunpack.c.l.b16 %v2665
  %v2716 = vunpack.c.h.b16 %v2665
  %v2717 = vunpack.c.l.b16 %v2666
  %v2718 = vunpack.c.h.b16 %v2666
  %v2719 = vunpack.c.l.b16 %v2667
  %v2720 = vunpack.c.h.b16 %v2667
  %v2721 = vunpack.c.l.b16 %v2668
  %v2722 = vunpack.c.h.b16 %v2668
  %v2723 = vpack.c.b16 %v2693, %v2691
  %v2724 = vpack.c.b16 %v2694, %v2692
  %v2725 = vpack.c.b16 %v2697, %v2695
  %v2726 = vpack.c.b16 %v2698, %v2696
  %v2727 = vpack.c.b16 %v2701, %v2699
  %v2728 = vpack.c.b16 %v2702, %v2700
  %v2729 = vpack.c.b16 %v2705, %v2703
  %v2730 = vpack.c.b16 %v2706, %v2704
  %v2731 = vpack.c.b16 %v2709, %v2707
  %v2732 = vpack.c.b16 %v2710, %v2708
  %v2733 = vpack.c.b16 %v2713, %v2711
  %v2734 = vpack.c.b16 %v2714, %v2712
  %v2735 = vpack.c.b16 %v2717, %v2715
  %v2736 = vpack.c.b16 %v2718, %v2716
  %v2737 = vpack.c.b16 %v2721, %v2719
  %v2738 = vpack.c.b16 %v2722, %v2720
  %2755 = vmatpush.bf16.msra.mxu0 %v2737
  %2756 = vmatpush.bf16.msra.mxu0 %v2735
  %2757 = vmatpush.bf16.msra.mxu0 %v2733
  %2758 = vmatpush.bf16.msra.mxu0 %v2731
  %2759 = vmatpush.bf16.msra.mxu0 %v2729
  %2760 = vmatpush.bf16.msra.mxu0 %v2727
  %2761 = vmatpush.bf16.msra.mxu0 %v2725
  %2762 = vmatpush.bf16.msra.mxu0 %v2723
  %2763 = vmatmul.bf16.gmra.mxu0 %v2652
  %v2764 = vpop.f32.mrf.mxu0
  %v2765 = vadd.f32 %v2671, %v2764
  %v2766 = vpop.f32.mrf.mxu0
  %2767 = vdwg.mxu0
  %2768 = vmatpush.bf16.msra.mxu0 %v2738
  %2769 = vmatpush.bf16.msra.mxu0 %v2736
  %2770 = vmatpush.bf16.msra.mxu0 %v2734
  %2771 = vmatpush.bf16.msra.mxu0 %v2732
  %2772 = vmatpush.bf16.msra.mxu0 %v2730
  %2773 = vmatpush.bf16.msra.mxu0 %v2728
  %2774 = vmatpush.bf16.msra.mxu0 %v2726
  %2775 = vmatpush.bf16.msra.mxu0 %v2724
  %2776 = vmatmul.bf16.gmra.mxu0 %v2652
  %v2777 = vpop.f32.mrf.mxu0
  %v2778 = vadd.f32 %v2672, %v2777
  %v2779 = vpop.f32.mrf.mxu0
  %2780 = vdwg.mxu0
  %v2781 = vmax.f32 %v2765, 0.0
  %v2782 = vmax.f32 %v2778, 0.0
  %v2783 = vpack.c.bf16 %v2781, %v2781
  %v2784 = vpack.c.bf16 %v2782, %v2782
  %v2785 = vld [vmem:[%s5] sm:$0xf]
  %v2786 = vld [vmem:[%s5 + $0x4] sm:$0xf]
  %v2787 = vld [vmem:[%s5 + $0x8] sm:$0xf]
  %v2788 = vld [vmem:[%s5 + $0xc] sm:$0xf]
  %v2789 = vld [vmem:[%s5 + $0x10] sm:$0xf]
  %v2790 = vld [vmem:[%s5 + $0x14] sm:$0xf]
  %v2791 = vld [vmem:[%s5 + $0x18] sm:$0xf]
  %v2792 = vld [vmem:[%s5 + $0x1c] sm:$0xf]
  %v2793 = vld [vmem:[%s5 + $0x20] sm:$0xf]
  %v2794 = vld [vmem:[%s5 + $0x24] sm:$0xf]
  %v2795 = vld [vmem:[%s5 + $0x28] sm:$0xf]
  %v2796 = vld [vmem:[%s5 + $0x2c] sm:$0xf]
  %v2797 = vld [vmem:[%s5 + $0x30] sm:$0xf]
  %v2798 = vld [vmem:[%s5 + $0x34] sm:$0xf]
  %v2799 = vld [vmem:[%s5 + $0x38] sm:$0xf]
  %v2800 = vld [vmem:[%s5 + $0x3c] sm:$0xf]
  %v2801 = vld [vmem:[%s5 + $0x40] sm:$0xf]
  %v2802 = vld [vmem:[%s5 + $0x44] sm:$0xf]
  %v2803 = vld [vmem:[%s5 + $0x48] sm:$0xf]
  %v2804 = vld [vmem:[%s5 + $0x4c] sm:$0xf]
  %v2805 = vld [vmem:[%s5 + $0x50] sm:$0xf]
  %v2806 = vld [vmem:[%s5 + $0x54] sm:$0xf]
  %v2807 = vld [vmem:[%s5 + $0x58] sm:$0xf]
  %v2808 = vld [vmem:[%s5 + $0x5c] sm:$0xf]
  %v2809 = vld [vmem:[%s5 + $0x60] sm:$0xf]
  %v2810 = vld [vmem:[%s5 + $0x64] sm:$0xf]
  %v2811 = vld [vmem:[%s5 + $0x68] sm:$0xf]
  %v2812 = vld [vmem:[%s5 + $0x6c] sm:$0xf]
  %v2813 = vld [vmem:[%s5 + $0x70] sm:$0xf]
  %v2814 = vld [vmem:[%s5 + $0x74] sm:$0xf]
  %v2815 = vld [vmem:[%s5 + $0x78] sm:$0xf]
  %v2816 = vld [vmem:[%s5 + $0x7c] sm:$0xf]
  %v2817 = vld [vmem:[%s6] sm:$0x1]
  %v2819 = vperm.slane %v2817, 0
  %v2853 = vunpack.c.l.b16 %v2785
  %v2854 = vunpack.c.l.b16 %v2786
  %v2855 = vunpack.c.l.b16 %v2787
  %v2856 = vunpack.c.l.b16 %v2788
  %v2857 = vunpack.c.l.b16 %v2789
  %v2858 = vunpack.c.l.b16 %v2790
  %v2859 = vunpack.c.l.b16 %v2791
  %v2860 = vunpack.c.l.b16 %v2792
  %v2861 = vunpack.c.l.b16 %v2793
  %v2862 = vunpack.c.l.b16 %v2794
  %v2863 = vunpack.c.l.b16 %v2795
  %v2864 = vunpack.c.l.b16 %v2796
  %v2865 = vunpack.c.l.b16 %v2797
  %v2866 = vunpack.c.l.b16 %v2798
  %v2867 = vunpack.c.l.b16 %v2799
  %v2868 = vunpack.c.l.b16 %v2800
  %v2869 = vunpack.c.l.b16 %v2801
  %v2870 = vunpack.c.l.b16 %v2802
  %v2871 = vunpack.c.l.b16 %v2803
  %v2872 = vunpack.c.l.b16 %v2804
  %v2873 = vunpack.c.l.b16 %v2805
  %v2874 = vunpack.c.l.b16 %v2806
  %v2875 = vunpack.c.l.b16 %v2807
  %v2876 = vunpack.c.l.b16 %v2808
  %v2877 = vunpack.c.l.b16 %v2809
  %v2878 = vunpack.c.l.b16 %v2810
  %v2879 = vunpack.c.l.b16 %v2811
  %v2880 = vunpack.c.l.b16 %v2812
  %v2881 = vunpack.c.l.b16 %v2813
  %v2882 = vunpack.c.l.b16 %v2814
  %v2883 = vunpack.c.l.b16 %v2815
  %v2884 = vunpack.c.l.b16 %v2816
  %v2885 = vpack.c.b16 %v2854, %v2853
  %v2886 = vpack.c.b16 %v2856, %v2855
  %v2887 = vpack.c.b16 %v2858, %v2857
  %v2888 = vpack.c.b16 %v2860, %v2859
  %v2889 = vpack.c.b16 %v2862, %v2861
  %v2890 = vpack.c.b16 %v2864, %v2863
  %v2891 = vpack.c.b16 %v2866, %v2865
  %v2892 = vpack.c.b16 %v2868, %v2867
  %v2893 = vpack.c.b16 %v2870, %v2869
  %v2894 = vpack.c.b16 %v2872, %v2871
  %v2895 = vpack.c.b16 %v2874, %v2873
  %v2896 = vpack.c.b16 %v2876, %v2875
  %v2897 = vpack.c.b16 %v2878, %v2877
  %v2898 = vpack.c.b16 %v2880, %v2879
  %v2899 = vpack.c.b16 %v2882, %v2881
  %v2900 = vpack.c.b16 %v2884, %v2883
  %2917 = vmatpush.bf16.msra.mxu0 %v2892
  %2918 = vmatpush.bf16.msra.mxu0 %v2891
  %2919 = vmatpush.bf16.msra.mxu0 %v2890
  %2920 = vmatpush.bf16.msra.mxu0 %v2889
  %2921 = vmatpush.bf16.msra.mxu0 %v2888
  %2922 = vmatpush.bf16.msra.mxu0 %v2887
  %2923 = vmatpush.bf16.msra.mxu0 %v2886
  %2924 = vmatpush.bf16.msra.mxu0 %v2885
  %2925 = vmatmul.bf16.gmra.mxu0 %v2783
  %v2926 = vpop.f32.mrf.mxu0
  %v2927 = vadd.f32 %v2819, %v2926
  %v2928 = vpop.f32.mrf.mxu0
  %2929 = vdwg.mxu0
  %2930 = vmatpush.bf16.msra.mxu0 %v2900
  %2931 = vmatpush.bf16.msra.mxu0 %v2899
  %2932 = vmatpush.bf16.msra.mxu0 %v2898
  %2933 = vmatpush.bf16.msra.mxu0 %v2897
  %2934 = vmatpush.bf16.msra.mxu0 %v2896
  %2935 = vmatpush.bf16.msra.mxu0 %v2895
  %2936 = vmatpush.bf16.msra.mxu0 %v2894
  %2937 = vmatpush.bf16.msra.mxu0 %v2893
  %2938 = vmatmul.bf16.gmra.mxu0 %v2784
  %v2939 = vpop.f32.mrf.mxu0
  %v2940 = vadd.f32 %v2927, %v2939
  %v2941 = vpop.f32.mrf.mxu0
  %2942 = vdwg.mxu0
  %2943 = vadd.xlane.f32.xlu0 %v2940
  %v2944 = vpop.xlane.xlu0 %2943
  %v2945 = vrcp.pop 128.0
  %v2946 = vmul.f32 128.0, %v2945
  %v2947 = vsub.f32 1.0, %v2946
  %v2948 = vmul.f32 %v2945, %v2947
  %v2949 = vadd.f32 %v2945, %v2948
  %vm2950 = vweird.f32 %v2945
  %v2951 = vsel %vm2950, %v2945, %v2949
  %v2952 = vmul.f32 %v2944, %v2951
  %v2953 = vsub.f32 %v2940, %v2952
  %v2954 = vmul.f32 %v2953, %v2953
  %2955 = vadd.xlane.f32.xlu0 %v2954
  %v2956 = vpop.xlane.xlu0 %2955
  %v2957 = vmul.f32 %v2956, %v2951
  %v2958 = vadd.f32 %v2957, 1e-05
  %v2959 = vrsqrt.pop %v2958
  %v2960 = vmul.f32 %v2959, %v2958
  %v2961 = vmul.f32 %v2960, %v2959
  %v2962 = vmul.f32 0.5, %v2961
  %v2963 = vsub.f32 1.5, %v2962
  %v2964 = vmul.f32 %v2959, %v2963
  %vm2965 = vweird.f32 %v2958
  %vm2966 = vweird.f32 %v2959
  %vm2967 = vmor %vm2965, %vm2966
  %v2968 = vsel %vm2967, %v2959, %v2964
  %v2969 = vmul.f32 %v2953, %v2968
  %v2970 = vld [vmem:[%s7] sm:$0x1]
  %v2972 = vperm.slane %v2970, 0
  %v2974 = vmul.f32 %v2969, %v2972
  %v2975 = vld [vmem:[%s8] sm:$0x1]
  %v2977 = vperm.slane %v2975, 0
  %v2979 = vadd.f32 %v2974, %v2977
  %v2980 = vmul.f32 %v2979, %v2979
  %2981 = vadd.xlane.f32.xlu0 %v2980
  %v2982 = vpop.xlane.xlu0 %2981
  %v2983 = vmax.f32 %v2982, 1e-24
  %v2984 = vrsqrt.pop %v2983
  %v2985 = vmul.f32 %v2984, %v2983
  %v2986 = vmul.f32 %v2985, %v2984
  %v2987 = vmul.f32 0.5, %v2986
  %v2988 = vsub.f32 1.5, %v2987
  %v2989 = vmul.f32 %v2984, %v2988
  %vm2990 = vweird.f32 %v2983
  %vm2991 = vweird.f32 %v2984
  %vm2992 = vmor %vm2990, %vm2991
  %v2993 = vsel %vm2992, %v2984, %v2989
  %v2994 = vmul.f32 %v2979, %v2993
  %2995 = vst [vmem:[%s9] sm:$0xff] %v2994
  // Predicated region
  $region38: #{visual_embedding_forward.1} parent=0 // pred_check
    _
  $region39: #{visual_embedding_forward.1} parent=0 // pred_check_branch
    %2997 = sbr.rel (0) target = $region41
  $region40: #{visual_embedding_forward.1} parent=0 // pred_region
    _
  $region41: #{visual_embedding_forward.1} parent=0 // pred_fallthru
    _
  // Predicated region
  $region42: #{visual_embedding_forward.1} parent=0 // pred_check
    _
  $region43: #{visual_embedding_forward.1} parent=0 // pred_check_branch
    %2999 = sbr.rel (0) target = $region45
  $region44: #{visual_embedding_forward.1} parent=0 // pred_region
    _
  $region45: #{visual_embedding_forward.1} parent=0 // pred_fallthru
    _

</llo_original>
